<compile_context>
chip_gen: v7x
topology: tpu7x:2x2x1
jax: 0.10.0
libtpu: 0.0.40
codegen_flags: <defaults>
</compile_context>

<pallas_src>
import jax
import jax.numpy as jnp
from jax.experimental import pallas as pl
from jax.experimental.pallas import tpu as pltpu


def _round_up(x, m):
    return ((x + m - 1) // m) * m


def decoder_kernel(emb_ref, h0_ref, enc_ref,
                   wih_ref, whh_ref, bih_ref, bhh_ref,
                   wka_ref, bka_ref, wv_ref, bv_ref,
                   wcq_ref, wcc_ref, bc_ref, wo_ref, bo_ref,
                   out_ref, hnew_ref):
    S, TB, H = enc_ref.shape
    f32 = jnp.float32
    bf16 = jnp.bfloat16

    def mm(a, w_ref):
        # bf16 operands, f32 accumulation on the MXU.
        return jnp.dot(a.astype(bf16), w_ref[...], preferred_element_type=f32)

    x = emb_ref[...]                       # (TB, H) f32  embedded input tokens
    h = h0_ref[...]                        # (TB, H) f32  previous hidden state

    # ---- fused GRU cell: two (TB, H) @ (H, 3H) matmuls, gate order (r, z, n) ----
    gi = mm(x, wih_ref) + bih_ref[...]     # (TB, 3H)
    gh = mm(h, whh_ref) + bhh_ref[...]     # (TB, 3H)
    r = jax.nn.sigmoid(gi[:, 0:H] + gh[:, 0:H])
    z = jax.nn.sigmoid(gi[:, H:2 * H] + gh[:, H:2 * H])
    n = jnp.tanh(gi[:, 2 * H:3 * H] + r * gh[:, 2 * H:3 * H])
    h_new = (1.0 - z) * n + z * h          # (TB, H) f32

    # ---- encoder-side projections on a flat (S*TB, H) view (tall MXU matmuls) ----
    # energy = attn(key(enc)) with the two linears pre-folded into (wka, bka).
    enc2 = enc_ref[...].reshape(S * TB, H).astype(bf16)             # (S*TB, H)
    energy = (jnp.dot(enc2, wka_ref[...], preferred_element_type=f32)
              + bka_ref[...]).reshape(S, TB, H)                     # (S, TB, H)
    val = (jnp.dot(enc2, wv_ref[...], preferred_element_type=f32)
           + bv_ref[...]).reshape(S, TB, H)                         # (S, TB, H)

    # ---- LAS attention: score over H, softmax over S (per batch row) ----
    scores = jnp.sum(h_new[None, :, :] * energy, axis=-1, keepdims=True)  # (S, TB, 1)
    scores = scores - jnp.max(scores, axis=0, keepdims=True)
    e = jnp.exp(scores)
    denom = jnp.sum(e, axis=0, keepdims=True)                       # (1, TB, 1)
    w_att = e * pl.reciprocal(denom, approx=True)                   # (S, TB, 1)

    context = jnp.sum(w_att * val, axis=0)                          # (TB, H)

    # ---- concat Linear (split into query / context halves) + tanh ----
    co = jnp.tanh(mm(h_new, wcq_ref) + mm(context, wcc_ref) + bc_ref[...])  # (TB, H)

    # ---- output projection (vocab padded to lanes, pad bias = -1e30) + softmax ----
    logits = mm(co, wo_ref) + bo_ref[...]                           # (TB, Op)
    logits = logits - jnp.max(logits, axis=1, keepdims=True)
    el = jnp.exp(logits)
    probs = el * pl.reciprocal(jnp.sum(el, axis=1, keepdims=True), approx=True)

    out_ref[...] = probs
    hnew_ref[...] = h_new


def decoder_forward_pallas(input_step, last_hidden, encoder_outputs, p):
    """input_step: (1, B) int32; last_hidden: (1, B, H); encoder_outputs: (S, B, H)."""
    B = input_step.shape[1]
    S = encoder_outputs.shape[0]
    H = p["hidden"]
    O = p["out_size"]

    f32 = jnp.float32
    bf16 = jnp.bfloat16

    # Batch tile: multiple of 8 sublanes; 128 rows per grid step at large batch.
    TB = 128 if B >= 128 else _round_up(B, 8)
    Bp = _round_up(B, TB)
    Op = _round_up(O, 128)          # lane-dense vocab for unmasked output stores
    pad_b = Bp - B

    # Embedding lookup (gather) stays in JAX glue.
    # TODO(synk): embedding gather + (inactive) dropout are not done in-kernel.
    emb = p["emb_table"][input_step[0]]                  # (B, H)
    h0 = last_hidden[0]                                  # (B, H)
    enc = encoder_outputs                                # (S, B, H), no transpose
    if pad_b:
        emb = jnp.pad(emb, ((0, pad_b), (0, 0)))
        h0 = jnp.pad(h0, ((0, pad_b), (0, 0)))
        enc = jnp.pad(enc, ((0, 0), (0, pad_b), (0, 0)))

    # Fused GRU weights: (H, 3H), gate order (r, z, n) along the lane axis.
    wih_t = p["W_ih"].T.astype(bf16)
    whh_t = p["W_hh"].T.astype(bf16)
    bih = p["b_ih"][None, :].astype(f32)
    bhh = p["b_hh"][None, :].astype(f32)

    # Fold key_network into the attn linear: energy = enc @ Wka + bka.
    wka = (p["Wk"].T @ p["Wa"].T).astype(bf16)                       # (H, H)
    bka = (p["bk"] @ p["Wa"].T + p["ba"])[None, :].astype(f32)       # (1, H)
    wv = p["Wv"].T.astype(bf16)
    bv = p["bv"][None, :].astype(f32)

    wcq = p["Wc"][:, :H].T.astype(bf16)                  # query half of concat Linear
    wcc = p["Wc"][:, H:].T.astype(bf16)                  # context half
    bc = p["bc"][None, :].astype(f32)

    # Output projection padded along vocab; padded columns get -1e30 bias so
    # they vanish exactly in the softmax.
    wo = jnp.zeros((H, Op), bf16).at[:, :O].set(p["Wo"].T.astype(bf16))
    bo = jnp.full((1, Op), -1e30, f32).at[0, :O].set(p["bo"].astype(f32))

    def wspec(shp):
        return pl.BlockSpec(shp, lambda i, _s=shp: (0,) * len(_s))

    out, hnew = pl.pallas_call(
        decoder_kernel,
        out_shape=(jax.ShapeDtypeStruct((Bp, Op), f32),
                   jax.ShapeDtypeStruct((Bp, H), f32)),
        grid=(Bp // TB,),
        in_specs=[
            pl.BlockSpec((TB, H), lambda i: (i, 0)),                 # emb
            pl.BlockSpec((TB, H), lambda i: (i, 0)),                 # h0
            pl.BlockSpec((S, TB, H), lambda i: (0, i, 0)),           # encoder outputs
            wspec((H, 3 * H)), wspec((H, 3 * H)),                    # GRU weights
            wspec((1, 3 * H)), wspec((1, 3 * H)),                    # GRU biases
            wspec((H, H)), wspec((1, H)),                            # folded key->attn
            wspec((H, H)), wspec((1, H)),                            # value network
            wspec((H, H)), wspec((H, H)), wspec((1, H)),             # concat linear
            wspec((H, Op)), wspec((1, Op)),                          # out linear
        ],
        out_specs=(pl.BlockSpec((TB, Op), lambda i: (i, 0)),
                   pl.BlockSpec((TB, H), lambda i: (i, 0))),
        compiler_params=pltpu.CompilerParams(
            dimension_semantics=("parallel",)),
    )(emb, h0, enc, wih_t, whh_t, bih, bhh, wka, bka, wv, bv,
      wcq, wcc, bc, wo, bo)

    output = out[:B, :O]                                  # (B, O) softmax probs
    last_hidden_new = hnew[:B][None]                      # (1, B, H)
    return output, last_hidden_new


def decoder_forward_reference(input_step, last_hidden, encoder_outputs, p):
    """Pure-JAX f32 reference mirroring the PyTorch forward exactly."""
    H = p["hidden"]
    emb = p["emb_table"][input_step]                      # (1, B, H)
    x = emb[0]                                            # (B, H)
    h = last_hidden[0]                                    # (B, H)

    gi = x @ p["W_ih"].T + p["b_ih"]
    gh = h @ p["W_hh"].T + p["b_hh"]
    r = jax.nn.sigmoid(gi[:, :H] + gh[:, :H])
    z = jax.nn.sigmoid(gi[:, H:2 * H] + gh[:, H:2 * H])
    n = jnp.tanh(gi[:, 2 * H:] + r * gh[:, 2 * H:])
    h_new = (1.0 - z) * n + z * h                         # (B, H)
    query = h_new[None]                                   # (1, B, H)

    key = encoder_outputs @ p["Wk"].T + p["bk"]           # (S, B, H)
    val = encoder_outputs @ p["Wv"].T + p["bv"]           # (S, B, H)
    energy = key @ p["Wa"].T + p["ba"]                    # (S, B, H)
    scores = jnp.sum(query * energy, axis=2)              # (S, B)
    attn_w = jax.nn.softmax(scores.T, axis=1)             # (B, S)
    context = jnp.einsum("bs,bsh->bh", attn_w, jnp.transpose(val, (1, 0, 2)))

    concat_in = jnp.concatenate([h_new, context], axis=1)
    co = jnp.tanh(concat_in @ p["Wc"].T + p["bc"])
    output = jax.nn.softmax(co @ p["Wo"].T + p["bo"], axis=1)
    return output, h_new[None]


def make_params(key, vocab, H, O):
    ks = jax.random.split(key, 16)
    norm = lambda k, shp: (0.1 * jax.random.normal(k, shp)).astype(jnp.float32)
    return {
        "hidden": H,
        "out_size": O,
        "emb_table": norm(ks[0], (vocab, H)),
        "W_ih": norm(ks[1], (3 * H, H)),
        "W_hh": norm(ks[2], (3 * H, H)),
        "b_ih": norm(ks[3], (3 * H,)),
        "b_hh": norm(ks[4], (3 * H,)),
        "Wk": norm(ks[5], (H, H)), "bk": norm(ks[6], (H,)),
        "Wv": norm(ks[7], (H, H)), "bv": norm(ks[8], (H,)),
        "Wa": norm(ks[9], (H, H)), "ba": norm(ks[10], (H,)),
        "Wc": norm(ks[11], (H, 2 * H)), "bc": norm(ks[12], (H,)),
        "Wo": norm(ks[13], (O, H)), "bo": norm(ks[14], (O,)),
    }


if __name__ == "__main__":
    B, S, H, O, V = 4, 8, 128, 80, 50
    key = jax.random.PRNGKey(0)
    kp, k1, k2, k3 = jax.random.split(key, 4)

    params = make_params(kp, V, H, O)
    input_step = jax.random.randint(k1, (1, B), 0, V, dtype=jnp.int32)      # (1, B)
    last_hidden = (0.1 * jax.random.normal(k2, (1, B, H))).astype(jnp.float32)
    encoder_outputs = (0.1 * jax.random.normal(k3, (S, B, H))).astype(jnp.float32)

    out_k, h_k = decoder_forward_pallas(input_step, last_hidden, encoder_outputs, params)
    out_k = jax.block_until_ready(out_k)
    h_k = jax.block_until_ready(h_k)

    out_r, h_r = decoder_forward_reference(input_step, last_hidden, encoder_outputs, params)

    assert out_k.shape == (B, O) and h_k.shape == (1, B, H)
    # bf16 matmuls + approx reciprocal in the kernel vs f32 reference -> loose tols.
    assert jnp.allclose(out_k, out_r, rtol=5e-2, atol=1e-2), "output mismatch"
    assert jnp.allclose(h_k, h_r, rtol=5e-2, atol=1e-2), "hidden mismatch"
    assert jnp.allclose(jnp.sum(out_k, axis=1), 1.0, atol=1e-2), "softmax rows must sum to 1"

    print("KERNEL_OK")
</pallas_src>

<mosaic_0001>
module attributes {stable_mosaic.version = 11 : i64} {
  func.func @decoder_kernel(%arg0: i32, %arg1: memref<8x128xf32, #tpu.memory_space<vmem>>, %arg2: memref<8x128xf32, #tpu.memory_space<vmem>>, %arg3: memref<8x8x128xf32, #tpu.memory_space<vmem>>, %arg4: memref<128x384xbf16, #tpu.memory_space<vmem>>, %arg5: memref<128x384xbf16, #tpu.memory_space<vmem>>, %arg6: memref<1x384xf32, #tpu.memory_space<vmem>>, %arg7: memref<1x384xf32, #tpu.memory_space<vmem>>, %arg8: memref<128x128xbf16, #tpu.memory_space<vmem>>, %arg9: memref<1x128xf32, #tpu.memory_space<vmem>>, %arg10: memref<128x128xbf16, #tpu.memory_space<vmem>>, %arg11: memref<1x128xf32, #tpu.memory_space<vmem>>, %arg12: memref<128x128xbf16, #tpu.memory_space<vmem>>, %arg13: memref<128x128xbf16, #tpu.memory_space<vmem>>, %arg14: memref<1x128xf32, #tpu.memory_space<vmem>>, %arg15: memref<128x128xbf16, #tpu.memory_space<vmem>>, %arg16: memref<1x128xf32, #tpu.memory_space<vmem>>, %arg17: memref<8x128xf32, #tpu.memory_space<vmem>>, %arg18: memref<8x128xf32, #tpu.memory_space<vmem>>) attributes {dimension_semantics = [#tpu.dimension_semantics<parallel>], iteration_bounds = array<i64: 1>, scalar_prefetch = 0 : i64, scratch_operands = 0 : i64, tpu.core_type = #tpu.core_type<tc>, window_params = [{transform_indices = @transform_0, window_bounds = array<i64: 8, 128>}, {transform_indices = @transform_1, window_bounds = array<i64: 8, 128>}, {transform_indices = @transform_2, window_bounds = array<i64: 8, 8, 128>}, {pipeline_mode = #tpu.pipeline_mode<synchronous>, transform_indices = @transform_3, window_bounds = array<i64: 128, 384>}, {pipeline_mode = #tpu.pipeline_mode<synchronous>, transform_indices = @transform_4, window_bounds = array<i64: 128, 384>}, {pipeline_mode = #tpu.pipeline_mode<synchronous>, transform_indices = @transform_5, window_bounds = array<i64: 1, 384>}, {pipeline_mode = #tpu.pipeline_mode<synchronous>, transform_indices = @transform_6, window_bounds = array<i64: 1, 384>}, {pipeline_mode = #tpu.pipeline_mode<synchronous>, transform_indices = @transform_7, window_bounds = array<i64: 128, 128>}, {pipeline_mode = #tpu.pipeline_mode<synchronous>, transform_indices = @transform_8, window_bounds = array<i64: 1, 128>}, {pipeline_mode = #tpu.pipeline_mode<synchronous>, transform_indices = @transform_9, window_bounds = array<i64: 128, 128>}, {pipeline_mode = #tpu.pipeline_mode<synchronous>, transform_indices = @transform_10, window_bounds = array<i64: 1, 128>}, {pipeline_mode = #tpu.pipeline_mode<synchronous>, transform_indices = @transform_11, window_bounds = array<i64: 128, 128>}, {pipeline_mode = #tpu.pipeline_mode<synchronous>, transform_indices = @transform_12, window_bounds = array<i64: 128, 128>}, {pipeline_mode = #tpu.pipeline_mode<synchronous>, transform_indices = @transform_13, window_bounds = array<i64: 1, 128>}, {pipeline_mode = #tpu.pipeline_mode<synchronous>, transform_indices = @transform_14, window_bounds = array<i64: 128, 128>}, {pipeline_mode = #tpu.pipeline_mode<synchronous>, transform_indices = @transform_15, window_bounds = array<i64: 1, 128>}, {transform_indices = @transform_16, window_bounds = array<i64: 8, 128>}, {transform_indices = @transform_17, window_bounds = array<i64: 8, 128>}]} {
    %c0 = arith.constant 0 : index
    %c0_0 = arith.constant 0 : index
    %0 = vector.load %arg1[%c0, %c0_0] : memref<8x128xf32, #tpu.memory_space<vmem>>, vector<8x128xf32>
    %c0_1 = arith.constant 0 : index
    %c0_2 = arith.constant 0 : index
    %1 = vector.load %arg2[%c0_1, %c0_2] : memref<8x128xf32, #tpu.memory_space<vmem>>, vector<8x128xf32>
    %2 = arith.truncf %0 : vector<8x128xf32> to vector<8x128xbf16>
    %c0_3 = arith.constant 0 : index
    %c0_4 = arith.constant 0 : index
    %3 = vector.load %arg4[%c0_3, %c0_4] : memref<128x384xbf16, #tpu.memory_space<vmem>>, vector<128x384xbf16>
    %cst = arith.constant dense<0.000000e+00> : vector<8x384xf32>
    %4 = tpu.matmul %2, %3, %cst {dimension_numbers = #tpu.dot_dimension_numbers<[1], [0], [0], [1], [0, 0, 1, 1], [], []>} : vector<8x128xbf16>, vector<128x384xbf16>, vector<8x384xf32> -> vector<8x384xf32>
    %c0_5 = arith.constant 0 : index
    %c0_6 = arith.constant 0 : index
    %5 = vector.load %arg6[%c0_5, %c0_6] : memref<1x384xf32, #tpu.memory_space<vmem>>, vector<1x384xf32>
    %6 = vector.broadcast %5 : vector<1x384xf32> to vector<8x384xf32>
    %7 = arith.addf %4, %6 : vector<8x384xf32>
    %8 = arith.truncf %1 : vector<8x128xf32> to vector<8x128xbf16>
    %c0_7 = arith.constant 0 : index
    %c0_8 = arith.constant 0 : index
    %9 = vector.load %arg5[%c0_7, %c0_8] : memref<128x384xbf16, #tpu.memory_space<vmem>>, vector<128x384xbf16>
    %cst_9 = arith.constant dense<0.000000e+00> : vector<8x384xf32>
    %10 = tpu.matmul %8, %9, %cst_9 {dimension_numbers = #tpu.dot_dimension_numbers<[1], [0], [0], [1], [0, 0, 1, 1], [], []>} : vector<8x128xbf16>, vector<128x384xbf16>, vector<8x384xf32> -> vector<8x384xf32>
    %c0_10 = arith.constant 0 : index
    %c0_11 = arith.constant 0 : index
    %11 = vector.load %arg7[%c0_10, %c0_11] : memref<1x384xf32, #tpu.memory_space<vmem>>, vector<1x384xf32>
    %12 = vector.broadcast %11 : vector<1x384xf32> to vector<8x384xf32>
    %13 = arith.addf %10, %12 : vector<8x384xf32>
    %14 = vector.extract_strided_slice %7 {offsets = [0, 0], sizes = [8, 128], strides = [1, 1]} : vector<8x384xf32> to vector<8x128xf32>
    %15 = vector.extract_strided_slice %13 {offsets = [0, 0], sizes = [8, 128], strides = [1, 1]} : vector<8x384xf32> to vector<8x128xf32>
    %16 = arith.addf %14, %15 : vector<8x128xf32>
    %17 = arith.negf %16 : vector<8x128xf32>
    %18 = math.exp %17 : vector<8x128xf32>
    %cst_12 = arith.constant 1.000000e+00 : f32
    %19 = vector.broadcast %cst_12 : f32 to vector<8x128xf32>
    %20 = arith.addf %19, %18 : vector<8x128xf32>
    %21 = arith.divf %19, %20 : vector<8x128xf32>
    %22 = vector.extract_strided_slice %7 {offsets = [0, 128], sizes = [8, 128], strides = [1, 1]} : vector<8x384xf32> to vector<8x128xf32>
    %23 = vector.extract_strided_slice %13 {offsets = [0, 128], sizes = [8, 128], strides = [1, 1]} : vector<8x384xf32> to vector<8x128xf32>
    %24 = arith.addf %22, %23 : vector<8x128xf32>
    %25 = arith.negf %24 : vector<8x128xf32>
    %26 = math.exp %25 : vector<8x128xf32>
    %cst_13 = arith.constant 1.000000e+00 : f32
    %27 = vector.broadcast %cst_13 : f32 to vector<8x128xf32>
    %28 = arith.addf %27, %26 : vector<8x128xf32>
    %29 = arith.divf %27, %28 : vector<8x128xf32>
    %30 = vector.extract_strided_slice %7 {offsets = [0, 256], sizes = [8, 128], strides = [1, 1]} : vector<8x384xf32> to vector<8x128xf32>
    %31 = vector.extract_strided_slice %13 {offsets = [0, 256], sizes = [8, 128], strides = [1, 1]} : vector<8x384xf32> to vector<8x128xf32>
    %32 = arith.mulf %21, %31 : vector<8x128xf32>
    %33 = arith.addf %30, %32 : vector<8x128xf32>
    %34 = math.tanh %33 : vector<8x128xf32>
    %cst_14 = arith.constant 1.000000e+00 : f32
    %35 = vector.broadcast %cst_14 : f32 to vector<8x128xf32>
    %36 = arith.subf %35, %29 : vector<8x128xf32>
    %37 = arith.mulf %36, %34 : vector<8x128xf32>
    %38 = arith.mulf %29, %1 : vector<8x128xf32>
    %39 = arith.addf %37, %38 : vector<8x128xf32>
    %c0_15 = arith.constant 0 : index
    %c0_16 = arith.constant 0 : index
    %c0_17 = arith.constant 0 : index
    %40 = vector.load %arg3[%c0_15, %c0_16, %c0_17] : memref<8x8x128xf32, #tpu.memory_space<vmem>>, vector<8x8x128xf32>
    %41 = vector.shape_cast %40 : vector<8x8x128xf32> to vector<64x128xf32>
    %42 = arith.truncf %41 : vector<64x128xf32> to vector<64x128xbf16>
    %c0_18 = arith.constant 0 : index
    %c0_19 = arith.constant 0 : index
    %43 = vector.load %arg8[%c0_18, %c0_19] : memref<128x128xbf16, #tpu.memory_space<vmem>>, vector<128x128xbf16>
    %cst_20 = arith.constant dense<0.000000e+00> : vector<64x128xf32>
    %44 = tpu.matmul %42, %43, %cst_20 {dimension_numbers = #tpu.dot_dimension_numbers<[1], [0], [0], [1], [0, 0, 1, 1], [], []>} : vector<64x128xbf16>, vector<128x128xbf16>, vector<64x128xf32> -> vector<64x128xf32>
    %c0_21 = arith.constant 0 : index
    %c0_22 = arith.constant 0 : index
    %45 = vector.load %arg9[%c0_21, %c0_22] : memref<1x128xf32, #tpu.memory_space<vmem>>, vector<1x128xf32>
    %46 = vector.broadcast %45 : vector<1x128xf32> to vector<64x128xf32>
    %47 = arith.addf %44, %46 : vector<64x128xf32>
    %48 = vector.shape_cast %47 : vector<64x128xf32> to vector<8x8x128xf32>
    %c0_23 = arith.constant 0 : index
    %c0_24 = arith.constant 0 : index
    %49 = vector.load %arg10[%c0_23, %c0_24] : memref<128x128xbf16, #tpu.memory_space<vmem>>, vector<128x128xbf16>
    %cst_25 = arith.constant dense<0.000000e+00> : vector<64x128xf32>
    %50 = tpu.matmul %42, %49, %cst_25 {dimension_numbers = #tpu.dot_dimension_numbers<[1], [0], [0], [1], [0, 0, 1, 1], [], []>} : vector<64x128xbf16>, vector<128x128xbf16>, vector<64x128xf32> -> vector<64x128xf32>
    %c0_26 = arith.constant 0 : index
    %c0_27 = arith.constant 0 : index
    %51 = vector.load %arg11[%c0_26, %c0_27] : memref<1x128xf32, #tpu.memory_space<vmem>>, vector<1x128xf32>
    %52 = vector.broadcast %51 : vector<1x128xf32> to vector<64x128xf32>
    %53 = arith.addf %50, %52 : vector<64x128xf32>
    %54 = vector.shape_cast %53 : vector<64x128xf32> to vector<8x8x128xf32>
    %55 = vector.shape_cast %39 : vector<8x128xf32> to vector<1x8x128xf32>
    %56 = vector.broadcast %55 : vector<1x8x128xf32> to vector<8x8x128xf32>
    %57 = arith.mulf %56, %48 : vector<8x8x128xf32>
    %cst_28 = arith.constant dense<0.000000e+00> : vector<8x8xf32>
    %58 = vector.multi_reduction <add>, %57, %cst_28 [2] : vector<8x8x128xf32> to vector<8x8xf32>
    %59 = vector.shape_cast %58 : vector<8x8xf32> to vector<8x8x1xf32>
    %cst_29 = arith.constant dense<0xFF800000> : vector<8x1xf32>
    %60 = vector.multi_reduction <maximumf>, %59, %cst_29 [0] : vector<8x8x1xf32> to vector<8x1xf32>
    %61 = vector.shape_cast %60 : vector<8x1xf32> to vector<1x8x1xf32>
    %62 = vector.broadcast %61 : vector<1x8x1xf32> to vector<8x8x1xf32>
    %63 = arith.subf %59, %62 : vector<8x8x1xf32>
    %64 = math.exp %63 : vector<8x8x1xf32>
    %cst_30 = arith.constant dense<0.000000e+00> : vector<8x1xf32>
    %65 = vector.multi_reduction <add>, %64, %cst_30 [0] : vector<8x8x1xf32> to vector<8x1xf32>
    %66 = vector.shape_cast %65 : vector<8x1xf32> to vector<1x8x1xf32>
    %67 = tpu.reciprocal %66 {approx = true} : vector<1x8x1xf32> -> vector<1x8x1xf32>
    %68 = vector.broadcast %67 : vector<1x8x1xf32> to vector<8x8x1xf32>
    %69 = arith.mulf %64, %68 : vector<8x8x1xf32>
    %70 = vector.broadcast %69 : vector<8x8x1xf32> to vector<8x8x128xf32>
    %71 = arith.mulf %70, %54 : vector<8x8x128xf32>
    %cst_31 = arith.constant dense<0.000000e+00> : vector<8x128xf32>
    %72 = vector.multi_reduction <add>, %71, %cst_31 [0] : vector<8x8x128xf32> to vector<8x128xf32>
    %73 = arith.truncf %39 : vector<8x128xf32> to vector<8x128xbf16>
    %c0_32 = arith.constant 0 : index
    %c0_33 = arith.constant 0 : index
    %74 = vector.load %arg12[%c0_32, %c0_33] : memref<128x128xbf16, #tpu.memory_space<vmem>>, vector<128x128xbf16>
    %cst_34 = arith.constant dense<0.000000e+00> : vector<8x128xf32>
    %75 = tpu.matmul %73, %74, %cst_34 {dimension_numbers = #tpu.dot_dimension_numbers<[1], [0], [0], [1], [0, 0, 1, 1], [], []>} : vector<8x128xbf16>, vector<128x128xbf16>, vector<8x128xf32> -> vector<8x128xf32>
    %76 = arith.truncf %72 : vector<8x128xf32> to vector<8x128xbf16>
    %c0_35 = arith.constant 0 : index
    %c0_36 = arith.constant 0 : index
    %77 = vector.load %arg13[%c0_35, %c0_36] : memref<128x128xbf16, #tpu.memory_space<vmem>>, vector<128x128xbf16>
    %cst_37 = arith.constant dense<0.000000e+00> : vector<8x128xf32>
    %78 = tpu.matmul %76, %77, %cst_37 {dimension_numbers = #tpu.dot_dimension_numbers<[1], [0], [0], [1], [0, 0, 1, 1], [], []>} : vector<8x128xbf16>, vector<128x128xbf16>, vector<8x128xf32> -> vector<8x128xf32>
    %79 = arith.addf %75, %78 : vector<8x128xf32>
    %c0_38 = arith.constant 0 : index
    %c0_39 = arith.constant 0 : index
    %80 = vector.load %arg14[%c0_38, %c0_39] : memref<1x128xf32, #tpu.memory_space<vmem>>, vector<1x128xf32>
    %81 = vector.broadcast %80 : vector<1x128xf32> to vector<8x128xf32>
    %82 = arith.addf %79, %81 : vector<8x128xf32>
    %83 = math.tanh %82 : vector<8x128xf32>
    %84 = arith.truncf %83 : vector<8x128xf32> to vector<8x128xbf16>
    %c0_40 = arith.constant 0 : index
    %c0_41 = arith.constant 0 : index
    %85 = vector.load %arg15[%c0_40, %c0_41] : memref<128x128xbf16, #tpu.memory_space<vmem>>, vector<128x128xbf16>
    %cst_42 = arith.constant dense<0.000000e+00> : vector<8x128xf32>
    %86 = tpu.matmul %84, %85, %cst_42 {dimension_numbers = #tpu.dot_dimension_numbers<[1], [0], [0], [1], [0, 0, 1, 1], [], []>} : vector<8x128xbf16>, vector<128x128xbf16>, vector<8x128xf32> -> vector<8x128xf32>
    %c0_43 = arith.constant 0 : index
    %c0_44 = arith.constant 0 : index
    %87 = vector.load %arg16[%c0_43, %c0_44] : memref<1x128xf32, #tpu.memory_space<vmem>>, vector<1x128xf32>
    %88 = vector.broadcast %87 : vector<1x128xf32> to vector<8x128xf32>
    %89 = arith.addf %86, %88 : vector<8x128xf32>
    %cst_45 = arith.constant dense<0xFF800000> : vector<8xf32>
    %90 = vector.multi_reduction <maximumf>, %89, %cst_45 [1] : vector<8x128xf32> to vector<8xf32>
    %91 = vector.shape_cast %90 : vector<8xf32> to vector<8x1xf32>
    %92 = vector.broadcast %91 : vector<8x1xf32> to vector<8x128xf32>
    %93 = arith.subf %89, %92 : vector<8x128xf32>
    %94 = math.exp %93 : vector<8x128xf32>
    %cst_46 = arith.constant dense<0.000000e+00> : vector<8xf32>
    %95 = vector.multi_reduction <add>, %94, %cst_46 [1] : vector<8x128xf32> to vector<8xf32>
    %96 = vector.shape_cast %95 : vector<8xf32> to vector<8x1xf32>
    %97 = tpu.reciprocal %96 {approx = true} : vector<8x1xf32> -> vector<8x1xf32>
    %98 = vector.broadcast %97 : vector<8x1xf32> to vector<8x128xf32>
    %99 = arith.mulf %94, %98 : vector<8x128xf32>
    %c0_47 = arith.constant 0 : index
    %c0_48 = arith.constant 0 : index
    %100 = vector.load %arg17[%c0_47, %c0_48] : memref<8x128xf32, #tpu.memory_space<vmem>>, vector<8x128xf32>
    tpu.vector_store %arg17[%c0_47, %c0_48], %99 {strides = array<i32>} : memref<8x128xf32, #tpu.memory_space<vmem>>, vector<8x128xf32>,
    %c0_49 = arith.constant 0 : index
    %c0_50 = arith.constant 0 : index
    %101 = vector.load %arg18[%c0_49, %c0_50] : memref<8x128xf32, #tpu.memory_space<vmem>>, vector<8x128xf32>
    tpu.vector_store %arg18[%c0_49, %c0_50], %39 {strides = array<i32>} : memref<8x128xf32, #tpu.memory_space<vmem>>, vector<8x128xf32>,
    return
  }
  func.func @transform_0(%arg0: i32) -> (i32, i32) {
    %c0_i32 = arith.constant 0 : i32
    %c0_i32_0 = arith.constant 0 : i32
    return %arg0, %c0_i32 : i32, i32
  }
  func.func @transform_1(%arg0: i32) -> (i32, i32) {
    %c0_i32 = arith.constant 0 : i32
    %c0_i32_0 = arith.constant 0 : i32
    return %arg0, %c0_i32 : i32, i32
  }
  func.func @transform_2(%arg0: i32) -> (i32, i32, i32) {
    %c0_i32 = arith.constant 0 : i32
    %c0_i32_0 = arith.constant 0 : i32
    %c0_i32_1 = arith.constant 0 : i32
    return %c0_i32, %arg0, %c0_i32_0 : i32, i32, i32
  }
  func.func @transform_3(%arg0: i32) -> (i32, i32) {
    %c0_i32 = arith.constant 0 : i32
    %c0_i32_0 = arith.constant 0 : i32
    %c0_i32_1 = arith.constant 0 : i32
    return %c0_i32, %c0_i32_0 : i32, i32
  }
  func.func @transform_4(%arg0: i32) -> (i32, i32) {
    %c0_i32 = arith.constant 0 : i32
    %c0_i32_0 = arith.constant 0 : i32
    %c0_i32_1 = arith.constant 0 : i32
    return %c0_i32, %c0_i32_0 : i32, i32
  }
  func.func @transform_5(%arg0: i32) -> (i32, i32) {
    %c0_i32 = arith.constant 0 : i32
    %c0_i32_0 = arith.constant 0 : i32
    %c0_i32_1 = arith.constant 0 : i32
    return %c0_i32, %c0_i32_0 : i32, i32
  }
  func.func @transform_6(%arg0: i32) -> (i32, i32) {
    %c0_i32 = arith.constant 0 : i32
    %c0_i32_0 = arith.constant 0 : i32
    %c0_i32_1 = arith.constant 0 : i32
    return %c0_i32, %c0_i32_0 : i32, i32
  }
  func.func @transform_7(%arg0: i32) -> (i32, i32) {
    %c0_i32 = arith.constant 0 : i32
    %c0_i32_0 = arith.constant 0 : i32
    %c0_i32_1 = arith.constant 0 : i32
    return %c0_i32, %c0_i32_0 : i32, i32
  }
  func.func @transform_8(%arg0: i32) -> (i32, i32) {
    %c0_i32 = arith.constant 0 : i32
    %c0_i32_0 = arith.constant 0 : i32
    %c0_i32_1 = arith.constant 0 : i32
    return %c0_i32, %c0_i32_0 : i32, i32
  }
  func.func @transform_9(%arg0: i32) -> (i32, i32) {
    %c0_i32 = arith.constant 0 : i32
    %c0_i32_0 = arith.constant 0 : i32
    %c0_i32_1 = arith.constant 0 : i32
    return %c0_i32, %c0_i32_0 : i32, i32
  }
  func.func @transform_10(%arg0: i32) -> (i32, i32) {
    %c0_i32 = arith.constant 0 : i32
    %c0_i32_0 = arith.constant 0 : i32
    %c0_i32_1 = arith.constant 0 : i32
    return %c0_i32, %c0_i32_0 : i32, i32
  }
  func.func @transform_11(%arg0: i32) -> (i32, i32) {
    %c0_i32 = arith.constant 0 : i32
    %c0_i32_0 = arith.constant 0 : i32
    %c0_i32_1 = arith.constant 0 : i32
    return %c0_i32, %c0_i32_0 : i32, i32
  }
  func.func @transform_12(%arg0: i32) -> (i32, i32) {
    %c0_i32 = arith.constant 0 : i32
    %c0_i32_0 = arith.constant 0 : i32
    %c0_i32_1 = arith.constant 0 : i32
    return %c0_i32, %c0_i32_0 : i32, i32
  }
  func.func @transform_13(%arg0: i32) -> (i32, i32) {
    %c0_i32 = arith.constant 0 : i32
    %c0_i32_0 = arith.constant 0 : i32
    %c0_i32_1 = arith.constant 0 : i32
    return %c0_i32, %c0_i32_0 : i32, i32
  }
  func.func @transform_14(%arg0: i32) -> (i32, i32) {
    %c0_i32 = arith.constant 0 : i32
    %c0_i32_0 = arith.constant 0 : i32
    %c0_i32_1 = arith.constant 0 : i32
    return %c0_i32, %c0_i32_0 : i32, i32
  }
  func.func @transform_15(%arg0: i32) -> (i32, i32) {
    %c0_i32 = arith.constant 0 : i32
    %c0_i32_0 = arith.constant 0 : i32
    %c0_i32_1 = arith.constant 0 : i32
    return %c0_i32, %c0_i32_0 : i32, i32
  }
  func.func @transform_16(%arg0: i32) -> (i32, i32) {
    %c0_i32 = arith.constant 0 : i32
    %c0_i32_0 = arith.constant 0 : i32
    return %arg0, %c0_i32 : i32, i32
  }
  func.func @transform_17(%arg0: i32) -> (i32, i32) {
    %c0_i32 = arith.constant 0 : i32
    %c0_i32_0 = arith.constant 0 : i32
    return %arg0, %c0_i32 : i32, i32
  }
}

</mosaic_0001>

<llo_original>
// kernel: tpu_custom_call.1
$region0: #{tpu_custom_call.1}
  #allocation0 [shape = 'u32[]', space=smem, size = 0x4, offset = 0x4, fixed_abs, tag = 'smem constant byte address 0x4 - core index']
  #allocation1 [shape = 'u32[144,128]{1,0:T(1,128)}', space=vmem, size = 0x12000, scoped, tag = 'internal scratch']
  %s0 = inlined_call_operand.hbm [shape: f32[8,128], index: 0, kind: input, shape index: {}]
  %s1 = inlined_call_operand.hbm [shape: f32[8,128], index: 1, kind: input, shape index: {}]
  %s2 = inlined_call_operand.hbm [shape: f32[8,8,128], index: 2, kind: input, shape index: {}]
  %s3 = inlined_call_operand.hbm [shape: bf16[128,384], index: 3, kind: input, shape index: {}]
  %s4 = inlined_call_operand.hbm [shape: bf16[128,384], index: 4, kind: input, shape index: {}]
  %s5 = inlined_call_operand.vmem [shape: f32[1,384], index: 5, kind: input, shape index: {}]
  %s6 = inlined_call_operand.vmem [shape: f32[1,384], index: 6, kind: input, shape index: {}]
  %s7 = inlined_call_operand.hbm [shape: bf16[128,128], index: 7, kind: input, shape index: {}]
  %s8 = inlined_call_operand.vmem [shape: f32[1,128], index: 8, kind: input, shape index: {}]
  %s9 = inlined_call_operand.hbm [shape: bf16[128,128], index: 9, kind: input, shape index: {}]
  %s10 = inlined_call_operand.vmem [shape: f32[1,128], index: 10, kind: input, shape index: {}]
  %s11 = inlined_call_operand.hbm [shape: bf16[128,128], index: 11, kind: input, shape index: {}]
  %s12 = inlined_call_operand.hbm [shape: bf16[128,128], index: 12, kind: input, shape index: {}]
  %s13 = inlined_call_operand.vmem [shape: f32[1,128], index: 13, kind: input, shape index: {}]
  %s14 = inlined_call_operand.hbm [shape: bf16[128,128], index: 14, kind: input, shape index: {}]
  %s15 = inlined_call_operand.vmem [shape: f32[1,128], index: 15, kind: input, shape index: {}]
  %s16 = inlined_call_operand.hbm [shape: f32[8,128], index: 16, kind: output, shape index: {0}]
  %s17 = inlined_call_operand.hbm [shape: f32[8,128], index: 17, kind: output, shape index: {1}]
  %18 = xla_tuple %s16, %s17
  %s19 = sld [smem:[#allocation0]]
  $region122: #{tpu_custom_call.1} parent=0
    _
  %s21 = ssub.s32 1, %s19
  %s22 = scalar_select 0, %s21, %s19
  $region1: #{tpu_custom_call.1} parent=0
    #allocation2 [shape = 'u8[4096]{0}', space=vmem, size = 0x1000, scoped, tag = 'input window, operand 0, single buffered']
    #allocation3 [shape = 's32[1]{0}', space=sflag, size = 0x4, scoped, tag = 'scoped memory for tpu_custom_call.1']
    #allocation4 [shape = 's32[1]{0}', space=sflag, size = 0x4, scoped, tag = 'scoped memory for tpu_custom_call.1']
    #allocation5 [shape = 'u8[4096]{0}', space=vmem, size = 0x1000, scoped, tag = 'input window, operand 1, single buffered']
    #allocation6 [shape = 's32[1]{0}', space=sflag, size = 0x4, scoped, tag = 'scoped memory for tpu_custom_call.1']
    #allocation7 [shape = 'u8[32768]{0}', space=vmem, size = 0x8000, scoped, tag = 'input window, operand 2, single buffered']
    #allocation8 [shape = 'u8[98304]{0}', space=vmem, size = 0x18000, scoped, tag = 'input window, operand 3, single buffered']
    #allocation9 [shape = 's32[1]{0}', space=sflag, size = 0x4, scoped, tag = 'scoped memory for tpu_custom_call.1']
    #allocation10 [shape = 'u8[98304]{0}', space=vmem, size = 0x18000, scoped, tag = 'input window, operand 4, single buffered']
    #allocation11 [shape = 'u8[32768]{0}', space=vmem, size = 0x8000, scoped, tag = 'input window, operand 7, single buffered']
    #allocation12 [shape = 's32[1]{0}', space=sflag, size = 0x4, scoped, tag = 'scoped memory for tpu_custom_call.1']
    #allocation13 [shape = 'u8[32768]{0}', space=vmem, size = 0x8000, scoped, tag = 'input window, operand 9, single buffered']
    #allocation14 [shape = 'u8[32768]{0}', space=vmem, size = 0x8000, scoped, tag = 'input window, operand 11, single buffered']
    #allocation15 [shape = 's32[1]{0}', space=sflag, size = 0x4, scoped, tag = 'scoped memory for tpu_custom_call.1']
    #allocation16 [shape = 'u8[32768]{0}', space=vmem, size = 0x8000, scoped, tag = 'input window, operand 12, single buffered']
    #allocation17 [shape = 'u8[32768]{0}', space=vmem, size = 0x8000, scoped, tag = 'input window, operand 14, single buffered']
    #allocation18 [shape = 's32[1]{0}', space=sflag, size = 0x4, scoped, tag = 'scoped memory for tpu_custom_call.1']
    #allocation19 [shape = 'u8[4096]{0}', space=vmem, size = 0x1000, scoped, tag = 'output window, operand 0, single buffered']
    #allocation20 [shape = 'u8[4096]{0}', space=vmem, size = 0x1000, scoped, tag = 'output window, operand 1, single buffered']
    #allocation21 [shape = 's32[1]{0}', space=sflag, size = 0x4, scoped, tag = 'scoped memory for tpu_custom_call.1']
    %23 = vsyncpa [#allocation3], 0
    %24 = vsyncpa [#allocation6], 0
    %25 = vsyncpa [#allocation9], 0
    %26 = vsyncpa [#allocation12], 0
    %27 = vsyncpa [#allocation15], 0
    %28 = vsyncpa [#allocation18], 0
    %29 = vsyncpa [#allocation4], 0
    %30 = vsyncpa [#allocation21], 0
    // Predicated region
    $region2: #{tpu_custom_call.1} parent=1 // pred_check
      _
    $region3: #{tpu_custom_call.1} parent=1 // pred_check_branch
      %32 = sbr.rel (0) target = $region5
    $region4: #{tpu_custom_call.1} parent=1 // pred_region
      %s34 = ssub.s32 128, 128
      %35 = vsyncadd [#allocation3], %s34
      %s37 = sshll.u32 [#allocation2], 4
      %s38 = int_to_ptr.vmem [resolvable:$true] %s37
      %40 = dma.hbm_to_vmem [thread:$0]  %s0, 128, %s38, [#allocation3]
    $region5: #{tpu_custom_call.1} parent=1 // pred_fallthru
      _
    // Predicated region
    $region6: #{tpu_custom_call.1} parent=1 // pred_check
      _
    $region7: #{tpu_custom_call.1} parent=1 // pred_check_branch
      %42 = sbr.rel (0) target = $region9
    $region8: #{tpu_custom_call.1} parent=1 // pred_region
      %s44 = ssub.s32 128, 128
      %45 = vsyncadd [#allocation6], %s44
      %s47 = sshll.u32 [#allocation5], 4
      %s48 = int_to_ptr.vmem [resolvable:$true] %s47
      %50 = dma.hbm_to_vmem [thread:$0]  %s1, 128, %s48, [#allocation6]
    $region9: #{tpu_custom_call.1} parent=1 // pred_fallthru
      _
    // Predicated region
    $region10: #{tpu_custom_call.1} parent=1 // pred_check
      _
    $region11: #{tpu_custom_call.1} parent=1 // pred_check_branch
      %52 = sbr.rel (0) target = $region13
    $region12: #{tpu_custom_call.1} parent=1 // pred_region
      %s54 = ssub.s32 1024, 1024
      %55 = vsyncadd [#allocation6], %s54
      %s56 = sshll.u32 [#allocation7], 4
      %s57 = int_to_ptr.vmem [resolvable:$true] %s56
      %62 = dma.hbm_to_vmem [thread:$0]  %s2, 1024, %s57, [#allocation6], 128, 128, 8
    $region13: #{tpu_custom_call.1} parent=1 // pred_fallthru
      _
    // Predicated region
    $region14: #{tpu_custom_call.1} parent=1 // pred_check
      _
    $region15: #{tpu_custom_call.1} parent=1 // pred_check_branch
      %64 = sbr.rel (0) target = $region17
    $region16: #{tpu_custom_call.1} parent=1 // pred_region
      %s66 = ssub.s32 3072, 3072
      %67 = vsyncadd [#allocation9], %s66
      %s68 = sshll.u32 [#allocation8], 4
      %s69 = int_to_ptr.vmem [resolvable:$true] %s68
      %74 = dma.hbm_to_vmem [thread:$0]  %s3, 3072, %s69, [#allocation9], 192, 192, 12
    $region17: #{tpu_custom_call.1} parent=1 // pred_fallthru
      _
    // Predicated region
    $region18: #{tpu_custom_call.1} parent=1 // pred_check
      _
    $region19: #{tpu_custom_call.1} parent=1 // pred_check_branch
      %76 = sbr.rel (0) target = $region21
    $region20: #{tpu_custom_call.1} parent=1 // pred_region
      %s78 = ssub.s32 3072, 3072
      %79 = vsyncadd [#allocation9], %s78
      %s80 = sshll.u32 [#allocation10], 4
      %s81 = int_to_ptr.vmem [resolvable:$true] %s80
      %86 = dma.hbm_to_vmem [thread:$0]  %s4, 3072, %s81, [#allocation9], 192, 192, 12
    $region21: #{tpu_custom_call.1} parent=1 // pred_fallthru
      _
    // Predicated region
    $region22: #{tpu_custom_call.1} parent=1 // pred_check
      _
    $region23: #{tpu_custom_call.1} parent=1 // pred_check_branch
      %88 = sbr.rel (0) target = $region25
    $region24: #{tpu_custom_call.1} parent=1 // pred_region
      _
    $region25: #{tpu_custom_call.1} parent=1 // pred_fallthru
      _
    // Predicated region
    $region26: #{tpu_custom_call.1} parent=1 // pred_check
      _
    $region27: #{tpu_custom_call.1} parent=1 // pred_check_branch
      %90 = sbr.rel (0) target = $region29
    $region28: #{tpu_custom_call.1} parent=1 // pred_region
      _
    $region29: #{tpu_custom_call.1} parent=1 // pred_fallthru
      _
    // Predicated region
    $region30: #{tpu_custom_call.1} parent=1 // pred_check
      _
    $region31: #{tpu_custom_call.1} parent=1 // pred_check_branch
      %92 = sbr.rel (0) target = $region33
    $region32: #{tpu_custom_call.1} parent=1 // pred_region
      %s94 = ssub.s32 1024, 1024
      %95 = vsyncadd [#allocation12], %s94
      %s96 = sshll.u32 [#allocation11], 4
      %s97 = int_to_ptr.vmem [resolvable:$true] %s96
      %102 = dma.hbm_to_vmem [thread:$0]  %s7, 1024, %s97, [#allocation12], 64, 64, 4
    $region33: #{tpu_custom_call.1} parent=1 // pred_fallthru
      _
    // Predicated region
    $region34: #{tpu_custom_call.1} parent=1 // pred_check
      _
    $region35: #{tpu_custom_call.1} parent=1 // pred_check_branch
      %104 = sbr.rel (0) target = $region37
    $region36: #{tpu_custom_call.1} parent=1 // pred_region
      _
    $region37: #{tpu_custom_call.1} parent=1 // pred_fallthru
      _
    // Predicated region
    $region38: #{tpu_custom_call.1} parent=1 // pred_check
      _
    $region39: #{tpu_custom_call.1} parent=1 // pred_check_branch
      %106 = sbr.rel (0) target = $region41
    $region40: #{tpu_custom_call.1} parent=1 // pred_region
      %s108 = ssub.s32 1024, 1024
      %109 = vsyncadd [#allocation12], %s108
      %s110 = sshll.u32 [#allocation13], 4
      %s111 = int_to_ptr.vmem [resolvable:$true] %s110
      %116 = dma.hbm_to_vmem [thread:$0]  %s9, 1024, %s111, [#allocation12], 64, 64, 4
    $region41: #{tpu_custom_call.1} parent=1 // pred_fallthru
      _
    // Predicated region
    $region42: #{tpu_custom_call.1} parent=1 // pred_check
      _
    $region43: #{tpu_custom_call.1} parent=1 // pred_check_branch
      %118 = sbr.rel (0) target = $region45
    $region44: #{tpu_custom_call.1} parent=1 // pred_region
      _
    $region45: #{tpu_custom_call.1} parent=1 // pred_fallthru
      _
    // Predicated region
    $region46: #{tpu_custom_call.1} parent=1 // pred_check
      _
    $region47: #{tpu_custom_call.1} parent=1 // pred_check_branch
      %120 = sbr.rel (0) target = $region49
    $region48: #{tpu_custom_call.1} parent=1 // pred_region
      %s122 = ssub.s32 1024, 1024
      %123 = vsyncadd [#allocation15], %s122
      %s124 = sshll.u32 [#allocation14], 4
      %s125 = int_to_ptr.vmem [resolvable:$true] %s124
      %130 = dma.hbm_to_vmem [thread:$0]  %s11, 1024, %s125, [#allocation15], 64, 64, 4
    $region49: #{tpu_custom_call.1} parent=1 // pred_fallthru
      _
    // Predicated region
    $region50: #{tpu_custom_call.1} parent=1 // pred_check
      _
    $region51: #{tpu_custom_call.1} parent=1 // pred_check_branch
      %132 = sbr.rel (0) target = $region53
    $region52: #{tpu_custom_call.1} parent=1 // pred_region
      %s134 = ssub.s32 1024, 1024
      %135 = vsyncadd [#allocation15], %s134
      %s136 = sshll.u32 [#allocation16], 4
      %s137 = int_to_ptr.vmem [resolvable:$true] %s136
      %142 = dma.hbm_to_vmem [thread:$0]  %s12, 1024, %s137, [#allocation15], 64, 64, 4
    $region53: #{tpu_custom_call.1} parent=1 // pred_fallthru
      _
    // Predicated region
    $region54: #{tpu_custom_call.1} parent=1 // pred_check
      _
    $region55: #{tpu_custom_call.1} parent=1 // pred_check_branch
      %144 = sbr.rel (0) target = $region57
    $region56: #{tpu_custom_call.1} parent=1 // pred_region
      _
    $region57: #{tpu_custom_call.1} parent=1 // pred_fallthru
      _
    // Predicated region
    $region58: #{tpu_custom_call.1} parent=1 // pred_check
      _
    $region59: #{tpu_custom_call.1} parent=1 // pred_check_branch
      %146 = sbr.rel (0) target = $region61
    $region60: #{tpu_custom_call.1} parent=1 // pred_region
      %s148 = ssub.s32 1024, 1024
      %149 = vsyncadd [#allocation18], %s148
      %s150 = sshll.u32 [#allocation17], 4
      %s151 = int_to_ptr.vmem [resolvable:$true] %s150
      %156 = dma.hbm_to_vmem [thread:$0]  %s14, 1024, %s151, [#allocation18], 64, 64, 4
    $region61: #{tpu_custom_call.1} parent=1 // pred_fallthru
      _
    // Predicated region
    $region62: #{tpu_custom_call.1} parent=1 // pred_check
      _
    $region63: #{tpu_custom_call.1} parent=1 // pred_check_branch
      %158 = sbr.rel (0) target = $region65
    $region64: #{tpu_custom_call.1} parent=1 // pred_region
      _
    $region65: #{tpu_custom_call.1} parent=1 // pred_fallthru
      _
    // Predicated region
    $region66: #{tpu_custom_call.1} parent=1 // pred_check
      _
    $region67: #{tpu_custom_call.1} parent=1 // pred_check_branch
      %160 = sbr.rel (0) target = $region69
    $region68: #{tpu_custom_call.1} parent=1 // pred_region
      %161 = dma.done [#allocation3], 128
    $region69: #{tpu_custom_call.1} parent=1 // pred_fallthru
      _
    // Predicated region
    $region70: #{tpu_custom_call.1} parent=1 // pred_check
      _
    $region71: #{tpu_custom_call.1} parent=1 // pred_check_branch
      %163 = sbr.rel (0) target = $region73
    $region72: #{tpu_custom_call.1} parent=1 // pred_region
      %164 = dma.done [#allocation6], 128
    $region73: #{tpu_custom_call.1} parent=1 // pred_fallthru
      _
    // Predicated region
    $region74: #{tpu_custom_call.1} parent=1 // pred_check
      _
    $region75: #{tpu_custom_call.1} parent=1 // pred_check_branch
      %166 = sbr.rel (0) target = $region77
    $region76: #{tpu_custom_call.1} parent=1 // pred_region
      %167 = dma.done [#allocation6], 1024
    $region77: #{tpu_custom_call.1} parent=1 // pred_fallthru
      _
    // Predicated region
    $region78: #{tpu_custom_call.1} parent=1 // pred_check
      _
    $region79: #{tpu_custom_call.1} parent=1 // pred_check_branch
      %169 = sbr.rel (0) target = $region81
    $region80: #{tpu_custom_call.1} parent=1 // pred_region
      %170 = dma.done [#allocation9], 3072
    $region81: #{tpu_custom_call.1} parent=1 // pred_fallthru
      _
    // Predicated region
    $region82: #{tpu_custom_call.1} parent=1 // pred_check
      _
    $region83: #{tpu_custom_call.1} parent=1 // pred_check_branch
      %172 = sbr.rel (0) target = $region85
    $region84: #{tpu_custom_call.1} parent=1 // pred_region
      %173 = dma.done [#allocation9], 3072
    $region85: #{tpu_custom_call.1} parent=1 // pred_fallthru
      _
    // Predicated region
    $region86: #{tpu_custom_call.1} parent=1 // pred_check
      _
    $region87: #{tpu_custom_call.1} parent=1 // pred_check_branch
      %175 = sbr.rel (0) target = $region89
    $region88: #{tpu_custom_call.1} parent=1 // pred_region
      %176 = dma.done [#allocation12], 1024
    $region89: #{tpu_custom_call.1} parent=1 // pred_fallthru
      _
    // Predicated region
    $region90: #{tpu_custom_call.1} parent=1 // pred_check
      _
    $region91: #{tpu_custom_call.1} parent=1 // pred_check_branch
      %178 = sbr.rel (0) target = $region93
    $region92: #{tpu_custom_call.1} parent=1 // pred_region
      %179 = dma.done [#allocation12], 1024
    $region93: #{tpu_custom_call.1} parent=1 // pred_fallthru
      _
    // Predicated region
    $region94: #{tpu_custom_call.1} parent=1 // pred_check
      _
    $region95: #{tpu_custom_call.1} parent=1 // pred_check_branch
      %181 = sbr.rel (0) target = $region97
    $region96: #{tpu_custom_call.1} parent=1 // pred_region
      %182 = dma.done [#allocation15], 1024
    $region97: #{tpu_custom_call.1} parent=1 // pred_fallthru
      _
    // Predicated region
    $region98: #{tpu_custom_call.1} parent=1 // pred_check
      _
    $region99: #{tpu_custom_call.1} parent=1 // pred_check_branch
      %184 = sbr.rel (0) target = $region101
    $region100: #{tpu_custom_call.1} parent=1 // pred_region
      %185 = dma.done [#allocation15], 1024
    $region101: #{tpu_custom_call.1} parent=1 // pred_fallthru
      _
    // Predicated region
    $region102: #{tpu_custom_call.1} parent=1 // pred_check
      _
    $region103: #{tpu_custom_call.1} parent=1 // pred_check_branch
      %187 = sbr.rel (0) target = $region105
    $region104: #{tpu_custom_call.1} parent=1 // pred_region
      %188 = dma.done [#allocation18], 1024
    $region105: #{tpu_custom_call.1} parent=1 // pred_fallthru
      _
    %v190 = vld [vmem:[#allocation2] sm:$0xff]
    %v191 = vld [vmem:[#allocation5] sm:$0xff]
    %v192 = vpack.c.bf16 %v190, %v190
    %v193 = vld [vmem:[#allocation8] sm:$0xff]
    %v194 = vld [vmem:[#allocation8 + $0x8] sm:$0xf]
    %v195 = vld [vmem:[#allocation8 + $0xc] sm:$0xff]
    %v196 = vld [vmem:[#allocation8 + $0x14] sm:$0xf]
    %v197 = vld [vmem:[#allocation8 + $0x18] sm:$0xff]
    %v198 = vld [vmem:[#allocation8 + $0x20] sm:$0xf]
    %v199 = vld [vmem:[#allocation8 + $0x24] sm:$0xff]
    %v200 = vld [vmem:[#allocation8 + $0x2c] sm:$0xf]
    %v201 = vld [vmem:[#allocation8 + $0x30] sm:$0xff]
    %v202 = vld [vmem:[#allocation8 + $0x38] sm:$0xf]
    %v203 = vld [vmem:[#allocation8 + $0x3c] sm:$0xff]
    %v204 = vld [vmem:[#allocation8 + $0x44] sm:$0xf]
    %v205 = vld [vmem:[#allocation8 + $0x48] sm:$0xff]
    %v206 = vld [vmem:[#allocation8 + $0x50] sm:$0xf]
    %v207 = vld [vmem:[#allocation8 + $0x54] sm:$0xff]
    %v208 = vld [vmem:[#allocation8 + $0x5c] sm:$0xf]
    %v209 = vld [vmem:[#allocation8 + $0x60] sm:$0xff]
    %v210 = vld [vmem:[#allocation8 + $0x68] sm:$0xf]
    %v211 = vld [vmem:[#allocation8 + $0x6c] sm:$0xff]
    %v212 = vld [vmem:[#allocation8 + $0x74] sm:$0xf]
    %v213 = vld [vmem:[#allocation8 + $0x78] sm:$0xff]
    %v214 = vld [vmem:[#allocation8 + $0x80] sm:$0xf]
    %v215 = vld [vmem:[#allocation8 + $0x84] sm:$0xff]
    %v216 = vld [vmem:[#allocation8 + $0x8c] sm:$0xf]
    %v217 = vld [vmem:[#allocation8 + $0x90] sm:$0xff]
    %v218 = vld [vmem:[#allocation8 + $0x98] sm:$0xf]
    %v219 = vld [vmem:[#allocation8 + $0x9c] sm:$0xff]
    %v220 = vld [vmem:[#allocation8 + $0xa4] sm:$0xf]
    %v221 = vld [vmem:[#allocation8 + $0xa8] sm:$0xff]
    %v222 = vld [vmem:[#allocation8 + $0xb0] sm:$0xf]
    %v223 = vld [vmem:[#allocation8 + $0xb4] sm:$0xff]
    %v224 = vld [vmem:[#allocation8 + $0xbc] sm:$0xf]
    %v225 = vld [vmem:[%s5] sm:$0x7]
    %v227 = vlaneseq
    %v228 = vshrl.u32 %v227, 7
    %v229 = vsub.s32 0, %v228
    %v230 = vrot.slane %v225, %v229
    %v231 = vlaneseq
    %v232 = vshrl.u32 %v231, 7
    %v233 = vsub.s32 1, %v232
    %v234 = vrot.slane %v225, %v233
    %v235 = vlaneseq
    %v236 = vshrl.u32 %v235, 7
    %v237 = vsub.s32 2, %v236
    %v238 = vrot.slane %v225, %v237
    %v274 = vunpack.c.l.b16 %v193
    %v275 = vunpack.c.h.b16 %v193
    %v276 = vunpack.c.l.b16 %v194
    %v277 = vunpack.c.l.b16 %v195
    %v278 = vunpack.c.h.b16 %v195
    %v279 = vunpack.c.l.b16 %v196
    %v280 = vunpack.c.l.b16 %v197
    %v281 = vunpack.c.h.b16 %v197
    %v282 = vunpack.c.l.b16 %v198
    %v283 = vunpack.c.l.b16 %v199
    %v284 = vunpack.c.h.b16 %v199
    %v285 = vunpack.c.l.b16 %v200
    %v286 = vunpack.c.l.b16 %v201
    %v287 = vunpack.c.h.b16 %v201
    %v288 = vunpack.c.l.b16 %v202
    %v289 = vunpack.c.l.b16 %v203
    %v290 = vunpack.c.h.b16 %v203
    %v291 = vunpack.c.l.b16 %v204
    %v292 = vunpack.c.l.b16 %v205
    %v293 = vunpack.c.h.b16 %v205
    %v294 = vunpack.c.l.b16 %v206
    %v295 = vunpack.c.l.b16 %v207
    %v296 = vunpack.c.h.b16 %v207
    %v297 = vunpack.c.l.b16 %v208
    %v298 = vunpack.c.l.b16 %v209
    %v299 = vunpack.c.h.b16 %v209
    %v300 = vunpack.c.l.b16 %v210
    %v301 = vunpack.c.l.b16 %v211
    %v302 = vunpack.c.h.b16 %v211
    %v303 = vunpack.c.l.b16 %v212
    %v304 = vunpack.c.l.b16 %v213
    %v305 = vunpack.c.h.b16 %v213
    %v306 = vunpack.c.l.b16 %v214
    %v307 = vunpack.c.l.b16 %v215
    %v308 = vunpack.c.h.b16 %v215
    %v309 = vunpack.c.l.b16 %v216
    %v310 = vunpack.c.l.b16 %v217
    %v311 = vunpack.c.h.b16 %v217
    %v312 = vunpack.c.l.b16 %v218
    %v313 = vunpack.c.l.b16 %v219
    %v314 = vunpack.c.h.b16 %v219
    %v315 = vunpack.c.l.b16 %v220
    %v316 = vunpack.c.l.b16 %v221
    %v317 = vunpack.c.h.b16 %v221
    %v318 = vunpack.c.l.b16 %v222
    %v319 = vunpack.c.l.b16 %v223
    %v320 = vunpack.c.h.b16 %v223
    %v321 = vunpack.c.l.b16 %v224
    %v322 = vpack.c.b16 %v277, %v274
    %v323 = vpack.c.b16 %v278, %v275
    %v324 = vpack.c.b16 %v279, %v276
    %v325 = vpack.c.b16 %v283, %v280
    %v326 = vpack.c.b16 %v284, %v281
    %v327 = vpack.c.b16 %v285, %v282
    %v328 = vpack.c.b16 %v289, %v286
    %v329 = vpack.c.b16 %v290, %v287
    %v330 = vpack.c.b16 %v291, %v288
    %v331 = vpack.c.b16 %v295, %v292
    %v332 = vpack.c.b16 %v296, %v293
    %v333 = vpack.c.b16 %v297, %v294
    %v334 = vpack.c.b16 %v301, %v298
    %v335 = vpack.c.b16 %v302, %v299
    %v336 = vpack.c.b16 %v303, %v300
    %v337 = vpack.c.b16 %v307, %v304
    %v338 = vpack.c.b16 %v308, %v305
    %v339 = vpack.c.b16 %v309, %v306
    %v340 = vpack.c.b16 %v313, %v310
    %v341 = vpack.c.b16 %v314, %v311
    %v342 = vpack.c.b16 %v315, %v312
    %v343 = vpack.c.b16 %v319, %v316
    %v344 = vpack.c.b16 %v320, %v317
    %v345 = vpack.c.b16 %v321, %v318
    %370 = vmatprep.subr.bf16.mxu0 %v323
    %371 = vmatpush1.bf16.msra.mxu0 %v322
    %372 = vmatprep.subr.bf16.mxu0 %v326
    %373 = vmatpush1.bf16.msra.mxu0 %v325
    %374 = vmatprep.subr.bf16.mxu0 %v329
    %375 = vmatpush1.bf16.msra.mxu0 %v328
    %376 = vmatprep.subr.bf16.mxu0 %v332
    %377 = vmatpush1.bf16.msra.mxu0 %v331
    %378 = vmatprep.subr.bf16.mxu0 %v335
    %379 = vmatpush1.bf16.msra.mxu0 %v334
    %380 = vmatprep.subr.bf16.mxu0 %v338
    %381 = vmatpush1.bf16.msra.mxu0 %v337
    %382 = vmatprep.subr.bf16.mxu0 %v341
    %383 = vmatpush1.bf16.msra.mxu0 %v340
    %384 = vmatprep.subr.bf16.mxu0 %v344
    %385 = vmatpush1.bf16.msra.mxu0 %v343
    %386 = vmatprep.subr.bf16.mxu0 0
    %387 = vmatpush1.bf16.msra.mxu0 0
    %388 = vmatprep.subr.bf16.mxu0 0
    %389 = vmatpush1.bf16.msra.mxu0 0
    %390 = vmatprep.subr.bf16.mxu0 0
    %391 = vmatpush1.bf16.msra.mxu0 0
    %392 = vmatprep.subr.bf16.mxu0 0
    %393 = vmatpush1.bf16.msra.mxu0 0
    %394 = vmatprep.subr.bf16.mxu0 0
    %395 = vmatpush1.bf16.msra.mxu0 0
    %396 = vmatprep.subr.bf16.mxu0 0
    %397 = vmatpush1.bf16.msra.mxu0 0
    %398 = vmatprep.subr.bf16.mxu0 0
    %399 = vmatpush1.bf16.msra.mxu0 0
    %400 = vmatprep.subr.bf16.mxu0 0
    %401 = vmatpush1.bf16.msra.mxu0 0
    %402 = vmatprep.mubr.bf16.mxu0 0
    %403 = vmatmul.mubr.bf16.gmra.mrb[0].mxu0 %v192
    %v404 = vpop.f32.mrb[0].mxu0
    %v405 = vadd.f32 %v230, %v404
    %v406 = vpop.f32.mrb[0].mxu0
    %v407 = vadd.f32 %v234, %v406
    %v408 = vpop.f32.mrb[0].mxu0
    %v409 = vpop.f32.mrb[0].mxu0
    %410 = vdwg.mxu0
    %411 = vmatprep.subr.bf16.mxu0 0
    %412 = vmatpush1.bf16.msra.mxu0 %v324
    %413 = vmatprep.subr.bf16.mxu0 0
    %414 = vmatpush1.bf16.msra.mxu0 %v327
    %415 = vmatprep.subr.bf16.mxu0 0
    %416 = vmatpush1.bf16.msra.mxu0 %v330
    %417 = vmatprep.subr.bf16.mxu0 0
    %418 = vmatpush1.bf16.msra.mxu0 %v333
    %419 = vmatprep.subr.bf16.mxu0 0
    %420 = vmatpush1.bf16.msra.mxu0 %v336
    %421 = vmatprep.subr.bf16.mxu0 0
    %422 = vmatpush1.bf16.msra.mxu0 %v339
    %423 = vmatprep.subr.bf16.mxu0 0
    %424 = vmatpush1.bf16.msra.mxu0 %v342
    %425 = vmatprep.subr.bf16.mxu0 0
    %426 = vmatpush1.bf16.msra.mxu0 %v345
    %427 = vmatprep.subr.bf16.mxu0 0
    %428 = vmatpush1.bf16.msra.mxu0 0
    %429 = vmatprep.subr.bf16.mxu0 0
    %430 = vmatpush1.bf16.msra.mxu0 0
    %431 = vmatprep.subr.bf16.mxu0 0
    %432 = vmatpush1.bf16.msra.mxu0 0
    %433 = vmatprep.subr.bf16.mxu0 0
    %434 = vmatpush1.bf16.msra.mxu0 0
    %435 = vmatprep.subr.bf16.mxu0 0
    %436 = vmatpush1.bf16.msra.mxu0 0
    %437 = vmatprep.subr.bf16.mxu0 0
    %438 = vmatpush1.bf16.msra.mxu0 0
    %439 = vmatprep.subr.bf16.mxu0 0
    %440 = vmatpush1.bf16.msra.mxu0 0
    %441 = vmatprep.subr.bf16.mxu0 0
    %442 = vmatpush1.bf16.msra.mxu0 0
    %443 = vmatprep.mubr.bf16.mxu0 0
    %444 = vmatmul.mubr.bf16.gmra.mrb[0].mxu0 %v192
    %v445 = vpop.f32.mrb[0].mxu0
    %v446 = vadd.f32 %v238, %v445
    %v447 = vpop.f32.mrb[0].mxu0
    %v448 = vpop.f32.mrb[0].mxu0
    %v449 = vpop.f32.mrb[0].mxu0
    %450 = vdwg.mxu0
    %v451 = vpack.c.bf16 %v191, %v191
    %v452 = vld [vmem:[#allocation10] sm:$0xff]
    %v453 = vld [vmem:[#allocation10 + $0x8] sm:$0xf]
    %v454 = vld [vmem:[#allocation10 + $0xc] sm:$0xff]
    %v455 = vld [vmem:[#allocation10 + $0x14] sm:$0xf]
    %v456 = vld [vmem:[#allocation10 + $0x18] sm:$0xff]
    %v457 = vld [vmem:[#allocation10 + $0x20] sm:$0xf]
    %v458 = vld [vmem:[#allocation10 + $0x24] sm:$0xff]
    %v459 = vld [vmem:[#allocation10 + $0x2c] sm:$0xf]
    %v460 = vld [vmem:[#allocation10 + $0x30] sm:$0xff]
    %v461 = vld [vmem:[#allocation10 + $0x38] sm:$0xf]
    %v462 = vld [vmem:[#allocation10 + $0x3c] sm:$0xff]
    %v463 = vld [vmem:[#allocation10 + $0x44] sm:$0xf]
    %v464 = vld [vmem:[#allocation10 + $0x48] sm:$0xff]
    %v465 = vld [vmem:[#allocation10 + $0x50] sm:$0xf]
    %v466 = vld [vmem:[#allocation10 + $0x54] sm:$0xff]
    %v467 = vld [vmem:[#allocation10 + $0x5c] sm:$0xf]
    %v468 = vld [vmem:[#allocation10 + $0x60] sm:$0xff]
    %v469 = vld [vmem:[#allocation10 + $0x68] sm:$0xf]
    %v470 = vld [vmem:[#allocation10 + $0x6c] sm:$0xff]
    %v471 = vld [vmem:[#allocation10 + $0x74] sm:$0xf]
    %v472 = vld [vmem:[#allocation10 + $0x78] sm:$0xff]
    %v473 = vld [vmem:[#allocation10 + $0x80] sm:$0xf]
    %v474 = vld [vmem:[#allocation10 + $0x84] sm:$0xff]
    %v475 = vld [vmem:[#allocation10 + $0x8c] sm:$0xf]
    %v476 = vld [vmem:[#allocation10 + $0x90] sm:$0xff]
    %v477 = vld [vmem:[#allocation10 + $0x98] sm:$0xf]
    %v478 = vld [vmem:[#allocation10 + $0x9c] sm:$0xff]
    %v479 = vld [vmem:[#allocation10 + $0xa4] sm:$0xf]
    %v480 = vld [vmem:[#allocation10 + $0xa8] sm:$0xff]
    %v481 = vld [vmem:[#allocation10 + $0xb0] sm:$0xf]
    %v482 = vld [vmem:[#allocation10 + $0xb4] sm:$0xff]
    %v483 = vld [vmem:[#allocation10 + $0xbc] sm:$0xf]
    %v484 = vld [vmem:[%s6] sm:$0x7]
    %v486 = vlaneseq
    %v487 = vshrl.u32 %v486, 7
    %v488 = vsub.s32 0, %v487
    %v489 = vrot.slane %v484, %v488
    %v490 = vlaneseq
    %v491 = vshrl.u32 %v490, 7
    %v492 = vsub.s32 1, %v491
    %v493 = vrot.slane %v484, %v492
    %v494 = vlaneseq
    %v495 = vshrl.u32 %v494, 7
    %v496 = vsub.s32 2, %v495
    %v497 = vrot.slane %v484, %v496
    %v533 = vunpack.c.l.b16 %v452
    %v534 = vunpack.c.h.b16 %v452
    %v535 = vunpack.c.l.b16 %v453
    %v536 = vunpack.c.l.b16 %v454
    %v537 = vunpack.c.h.b16 %v454
    %v538 = vunpack.c.l.b16 %v455
    %v539 = vunpack.c.l.b16 %v456
    %v540 = vunpack.c.h.b16 %v456
    %v541 = vunpack.c.l.b16 %v457
    %v542 = vunpack.c.l.b16 %v458
    %v543 = vunpack.c.h.b16 %v458
    %v544 = vunpack.c.l.b16 %v459
    %v545 = vunpack.c.l.b16 %v460
    %v546 = vunpack.c.h.b16 %v460
    %v547 = vunpack.c.l.b16 %v461
    %v548 = vunpack.c.l.b16 %v462
    %v549 = vunpack.c.h.b16 %v462
    %v550 = vunpack.c.l.b16 %v463
    %v551 = vunpack.c.l.b16 %v464
    %v552 = vunpack.c.h.b16 %v464
    %v553 = vunpack.c.l.b16 %v465
    %v554 = vunpack.c.l.b16 %v466
    %v555 = vunpack.c.h.b16 %v466
    %v556 = vunpack.c.l.b16 %v467
    %v557 = vunpack.c.l.b16 %v468
    %v558 = vunpack.c.h.b16 %v468
    %v559 = vunpack.c.l.b16 %v469
    %v560 = vunpack.c.l.b16 %v470
    %v561 = vunpack.c.h.b16 %v470
    %v562 = vunpack.c.l.b16 %v471
    %v563 = vunpack.c.l.b16 %v472
    %v564 = vunpack.c.h.b16 %v472
    %v565 = vunpack.c.l.b16 %v473
    %v566 = vunpack.c.l.b16 %v474
    %v567 = vunpack.c.h.b16 %v474
    %v568 = vunpack.c.l.b16 %v475
    %v569 = vunpack.c.l.b16 %v476
    %v570 = vunpack.c.h.b16 %v476
    %v571 = vunpack.c.l.b16 %v477
    %v572 = vunpack.c.l.b16 %v478
    %v573 = vunpack.c.h.b16 %v478
    %v574 = vunpack.c.l.b16 %v479
    %v575 = vunpack.c.l.b16 %v480
    %v576 = vunpack.c.h.b16 %v480
    %v577 = vunpack.c.l.b16 %v481
    %v578 = vunpack.c.l.b16 %v482
    %v579 = vunpack.c.h.b16 %v482
    %v580 = vunpack.c.l.b16 %v483
    %v581 = vpack.c.b16 %v536, %v533
    %v582 = vpack.c.b16 %v537, %v534
    %v583 = vpack.c.b16 %v538, %v535
    %v584 = vpack.c.b16 %v542, %v539
    %v585 = vpack.c.b16 %v543, %v540
    %v586 = vpack.c.b16 %v544, %v541
    %v587 = vpack.c.b16 %v548, %v545
    %v588 = vpack.c.b16 %v549, %v546
    %v589 = vpack.c.b16 %v550, %v547
    %v590 = vpack.c.b16 %v554, %v551
    %v591 = vpack.c.b16 %v555, %v552
    %v592 = vpack.c.b16 %v556, %v553
    %v593 = vpack.c.b16 %v560, %v557
    %v594 = vpack.c.b16 %v561, %v558
    %v595 = vpack.c.b16 %v562, %v559
    %v596 = vpack.c.b16 %v566, %v563
    %v597 = vpack.c.b16 %v567, %v564
    %v598 = vpack.c.b16 %v568, %v565
    %v599 = vpack.c.b16 %v572, %v569
    %v600 = vpack.c.b16 %v573, %v570
    %v601 = vpack.c.b16 %v574, %v571
    %v602 = vpack.c.b16 %v578, %v575
    %v603 = vpack.c.b16 %v579, %v576
    %v604 = vpack.c.b16 %v580, %v577
    %629 = vmatprep.subr.bf16.mxu0 %v582
    %630 = vmatpush1.bf16.msra.mxu0 %v581
    %631 = vmatprep.subr.bf16.mxu0 %v585
    %632 = vmatpush1.bf16.msra.mxu0 %v584
    %633 = vmatprep.subr.bf16.mxu0 %v588
    %634 = vmatpush1.bf16.msra.mxu0 %v587
    %635 = vmatprep.subr.bf16.mxu0 %v591
    %636 = vmatpush1.bf16.msra.mxu0 %v590
    %637 = vmatprep.subr.bf16.mxu0 %v594
    %638 = vmatpush1.bf16.msra.mxu0 %v593
    %639 = vmatprep.subr.bf16.mxu0 %v597
    %640 = vmatpush1.bf16.msra.mxu0 %v596
    %641 = vmatprep.subr.bf16.mxu0 %v600
    %642 = vmatpush1.bf16.msra.mxu0 %v599
    %643 = vmatprep.subr.bf16.mxu0 %v603
    %644 = vmatpush1.bf16.msra.mxu0 %v602
    %645 = vmatprep.subr.bf16.mxu0 0
    %646 = vmatpush1.bf16.msra.mxu0 0
    %647 = vmatprep.subr.bf16.mxu0 0
    %648 = vmatpush1.bf16.msra.mxu0 0
    %649 = vmatprep.subr.bf16.mxu0 0
    %650 = vmatpush1.bf16.msra.mxu0 0
    %651 = vmatprep.subr.bf16.mxu0 0
    %652 = vmatpush1.bf16.msra.mxu0 0
    %653 = vmatprep.subr.bf16.mxu0 0
    %654 = vmatpush1.bf16.msra.mxu0 0
    %655 = vmatprep.subr.bf16.mxu0 0
    %656 = vmatpush1.bf16.msra.mxu0 0
    %657 = vmatprep.subr.bf16.mxu0 0
    %658 = vmatpush1.bf16.msra.mxu0 0
    %659 = vmatprep.subr.bf16.mxu0 0
    %660 = vmatpush1.bf16.msra.mxu0 0
    %661 = vmatprep.mubr.bf16.mxu0 0
    %662 = vmatmul.mubr.bf16.gmra.mrb[0].mxu0 %v451
    %v663 = vpop.f32.mrb[0].mxu0
    %v664 = vadd.f32 %v489, %v663
    %v665 = vpop.f32.mrb[0].mxu0
    %v666 = vadd.f32 %v493, %v665
    %v667 = vpop.f32.mrb[0].mxu0
    %v668 = vpop.f32.mrb[0].mxu0
    %669 = vdwg.mxu0
    %670 = vmatprep.subr.bf16.mxu0 0
    %671 = vmatpush1.bf16.msra.mxu0 %v583
    %672 = vmatprep.subr.bf16.mxu0 0
    %673 = vmatpush1.bf16.msra.mxu0 %v586
    %674 = vmatprep.subr.bf16.mxu0 0
    %675 = vmatpush1.bf16.msra.mxu0 %v589
    %676 = vmatprep.subr.bf16.mxu0 0
    %677 = vmatpush1.bf16.msra.mxu0 %v592
    %678 = vmatprep.subr.bf16.mxu0 0
    %679 = vmatpush1.bf16.msra.mxu0 %v595
    %680 = vmatprep.subr.bf16.mxu0 0
    %681 = vmatpush1.bf16.msra.mxu0 %v598
    %682 = vmatprep.subr.bf16.mxu0 0
    %683 = vmatpush1.bf16.msra.mxu0 %v601
    %684 = vmatprep.subr.bf16.mxu0 0
    %685 = vmatpush1.bf16.msra.mxu0 %v604
    %686 = vmatprep.subr.bf16.mxu0 0
    %687 = vmatpush1.bf16.msra.mxu0 0
    %688 = vmatprep.subr.bf16.mxu0 0
    %689 = vmatpush1.bf16.msra.mxu0 0
    %690 = vmatprep.subr.bf16.mxu0 0
    %691 = vmatpush1.bf16.msra.mxu0 0
    %692 = vmatprep.subr.bf16.mxu0 0
    %693 = vmatpush1.bf16.msra.mxu0 0
    %694 = vmatprep.subr.bf16.mxu0 0
    %695 = vmatpush1.bf16.msra.mxu0 0
    %696 = vmatprep.subr.bf16.mxu0 0
    %697 = vmatpush1.bf16.msra.mxu0 0
    %698 = vmatprep.subr.bf16.mxu0 0
    %699 = vmatpush1.bf16.msra.mxu0 0
    %700 = vmatprep.subr.bf16.mxu0 0
    %701 = vmatpush1.bf16.msra.mxu0 0
    %702 = vmatprep.mubr.bf16.mxu0 0
    %703 = vmatmul.mubr.bf16.gmra.mrb[0].mxu0 %v451
    %v704 = vpop.f32.mrb[0].mxu0
    %v705 = vadd.f32 %v497, %v704
    %v706 = vpop.f32.mrb[0].mxu0
    %v707 = vpop.f32.mrb[0].mxu0
    %v708 = vpop.f32.mrb[0].mxu0
    %709 = vdwg.mxu0
    %v710 = vadd.f32 %v405, %v664
    %v711 = vxor.u32 %v710, 2147483648
    %v712 = vmul.f32 %v711, 1.442695
    %v713 = vpow.pop %v712
    %v714 = vadd.f32 %v713, 1.0
    %v715 = vrcp.pop %v714
    %v716 = vmul.f32 1.0, %v715
    %v717 = vadd.f32 %v407, %v666
    %v718 = vxor.u32 %v717, 2147483648
    %v719 = vmul.f32 %v718, 1.442695
    %v720 = vpow.pop %v719
    %v721 = vadd.f32 %v720, 1.0
    %v722 = vrcp.pop %v721
    %v723 = vmul.f32 1.0, %v722
    %v724 = vmul.f32 %v716, %v705
    %v725 = vadd.f32 %v446, %v724
    %v726 = vtanh.pop %v725
    %v727 = vsub.f32 1.0, %v723
    %v728 = vmul.f32 %v727, %v726
    %v729 = vmul.f32 %v723, %v191
    %v730 = vadd.f32 %v728, %v729
    %v731 = vld [vmem:[#allocation7] sm:$0xff]
    %v732 = vld [vmem:[#allocation7 + $0x8] sm:$0xff]
    %v733 = vld [vmem:[#allocation7 + $0x10] sm:$0xff]
    %v734 = vld [vmem:[#allocation7 + $0x18] sm:$0xff]
    %v735 = vld [vmem:[#allocation7 + $0x20] sm:$0xff]
    %v736 = vld [vmem:[#allocation7 + $0x28] sm:$0xff]
    %v737 = vld [vmem:[#allocation7 + $0x30] sm:$0xff]
    %v738 = vld [vmem:[#allocation7 + $0x38] sm:$0xff]
    %v739 = vpack.c.bf16 %v732, %v731
    %v740 = vpack.c.bf16 %v734, %v733
    %v741 = vpack.c.bf16 %v736, %v735
    %v742 = vpack.c.bf16 %v738, %v737
    %v743 = vld [vmem:[#allocation11] sm:$0xf]
    %v744 = vld [vmem:[#allocation11 + $0x4] sm:$0xf]
    %v745 = vld [vmem:[#allocation11 + $0x8] sm:$0xf]
    %v746 = vld [vmem:[#allocation11 + $0xc] sm:$0xf]
    %v747 = vld [vmem:[#allocation11 + $0x10] sm:$0xf]
    %v748 = vld [vmem:[#allocation11 + $0x14] sm:$0xf]
    %v749 = vld [vmem:[#allocation11 + $0x18] sm:$0xf]
    %v750 = vld [vmem:[#allocation11 + $0x1c] sm:$0xf]
    %v751 = vld [vmem:[#allocation11 + $0x20] sm:$0xf]
    %v752 = vld [vmem:[#allocation11 + $0x24] sm:$0xf]
    %v753 = vld [vmem:[#allocation11 + $0x28] sm:$0xf]
    %v754 = vld [vmem:[#allocation11 + $0x2c] sm:$0xf]
    %v755 = vld [vmem:[#allocation11 + $0x30] sm:$0xf]
    %v756 = vld [vmem:[#allocation11 + $0x34] sm:$0xf]
    %v757 = vld [vmem:[#allocation11 + $0x38] sm:$0xf]
    %v758 = vld [vmem:[#allocation11 + $0x3c] sm:$0xf]
    %v759 = vld [vmem:[%s8] sm:$0x1]
    %v761 = vlaneseq
    %v762 = vshrl.u32 %v761, 7
    %v763 = vsub.s32 0, %v762
    %v764 = vrot.slane %v759, %v763
    %v782 = vunpack.c.l.b16 %v743
    %v783 = vunpack.c.l.b16 %v744
    %v784 = vunpack.c.l.b16 %v745
    %v785 = vunpack.c.l.b16 %v746
    %v786 = vunpack.c.l.b16 %v747
    %v787 = vunpack.c.l.b16 %v748
    %v788 = vunpack.c.l.b16 %v749
    %v789 = vunpack.c.l.b16 %v750
    %v790 = vunpack.c.l.b16 %v751
    %v791 = vunpack.c.l.b16 %v752
    %v792 = vunpack.c.l.b16 %v753
    %v793 = vunpack.c.l.b16 %v754
    %v794 = vunpack.c.l.b16 %v755
    %v795 = vunpack.c.l.b16 %v756
    %v796 = vunpack.c.l.b16 %v757
    %v797 = vunpack.c.l.b16 %v758
    %v798 = vpack.c.b16 %v783, %v782
    %v799 = vpack.c.b16 %v785, %v784
    %v800 = vpack.c.b16 %v787, %v786
    %v801 = vpack.c.b16 %v789, %v788
    %v802 = vpack.c.b16 %v791, %v790
    %v803 = vpack.c.b16 %v793, %v792
    %v804 = vpack.c.b16 %v795, %v794
    %v805 = vpack.c.b16 %v797, %v796
    %814 = vmatprep.subr.bf16.mxu0 0
    %815 = vmatpush1.bf16.msra.mxu0 %v798
    %816 = vmatprep.subr.bf16.mxu0 0
    %817 = vmatpush1.bf16.msra.mxu0 %v799
    %818 = vmatprep.subr.bf16.mxu0 0
    %819 = vmatpush1.bf16.msra.mxu0 %v800
    %820 = vmatprep.subr.bf16.mxu0 0
    %821 = vmatpush1.bf16.msra.mxu0 %v801
    %822 = vmatprep.subr.bf16.mxu0 0
    %823 = vmatpush1.bf16.msra.mxu0 %v802
    %824 = vmatprep.subr.bf16.mxu0 0
    %825 = vmatpush1.bf16.msra.mxu0 %v803
    %826 = vmatprep.subr.bf16.mxu0 0
    %827 = vmatpush1.bf16.msra.mxu0 %v804
    %828 = vmatprep.subr.bf16.mxu0 0
    %829 = vmatpush1.bf16.msra.mxu0 %v805
    %830 = vmatprep.subr.bf16.mxu0 0
    %831 = vmatpush1.bf16.msra.mxu0 0
    %832 = vmatprep.subr.bf16.mxu0 0
    %833 = vmatpush1.bf16.msra.mxu0 0
    %834 = vmatprep.subr.bf16.mxu0 0
    %835 = vmatpush1.bf16.msra.mxu0 0
    %836 = vmatprep.subr.bf16.mxu0 0
    %837 = vmatpush1.bf16.msra.mxu0 0
    %838 = vmatprep.subr.bf16.mxu0 0
    %839 = vmatpush1.bf16.msra.mxu0 0
    %840 = vmatprep.subr.bf16.mxu0 0
    %841 = vmatpush1.bf16.msra.mxu0 0
    %842 = vmatprep.subr.bf16.mxu0 0
    %843 = vmatpush1.bf16.msra.mxu0 0
    %844 = vmatprep.subr.bf16.mxu0 0
    %845 = vmatpush1.bf16.msra.mxu0 0
    %846 = vmatprep.mubr.bf16.mxu0 0
    %847 = vmatmul.mubr.bf16.gmra.mrb[0].mxu0 %v739
    %v848 = vpop.f32.mrb[0].mxu0
    %v849 = vadd.f32 %v764, %v848
    %v850 = vpop.f32.mrb[0].mxu0
    %v851 = vpop.f32.mrb[0].mxu0
    %v852 = vadd.f32 %v764, %v851
    %v853 = vpop.f32.mrb[0].mxu0
    %854 = vmatprep.mubr.bf16.mxu0 0
    %855 = vmatmul.mubr.bf16.gmra.mrb[0].mxu0 %v740
    %v856 = vpop.f32.mrb[0].mxu0
    %v857 = vadd.f32 %v764, %v856
    %v858 = vpop.f32.mrb[0].mxu0
    %v859 = vpop.f32.mrb[0].mxu0
    %v860 = vadd.f32 %v764, %v859
    %v861 = vpop.f32.mrb[0].mxu0
    %862 = vmatprep.mubr.bf16.mxu0 0
    %863 = vmatmul.mubr.bf16.gmra.mrb[0].mxu0 %v741
    %v864 = vpop.f32.mrb[0].mxu0
    %v865 = vadd.f32 %v764, %v864
    %v866 = vpop.f32.mrb[0].mxu0
    %v867 = vpop.f32.mrb[0].mxu0
    %v868 = vadd.f32 %v764, %v867
    %v869 = vpop.f32.mrb[0].mxu0
    %870 = vmatprep.mubr.bf16.mxu0 0
    %871 = vmatmul.mubr.bf16.gmra.mrb[0].mxu0 %v742
    %v872 = vpop.f32.mrb[0].mxu0
    %v873 = vadd.f32 %v764, %v872
    %v874 = vpop.f32.mrb[0].mxu0
    %v875 = vpop.f32.mrb[0].mxu0
    %v876 = vadd.f32 %v764, %v875
    %v877 = vpop.f32.mrb[0].mxu0
    %878 = vdwg.mxu0
    %v879 = vld [vmem:[#allocation13] sm:$0xf]
    %v880 = vld [vmem:[#allocation13 + $0x4] sm:$0xf]
    %v881 = vld [vmem:[#allocation13 + $0x8] sm:$0xf]
    %v882 = vld [vmem:[#allocation13 + $0xc] sm:$0xf]
    %v883 = vld [vmem:[#allocation13 + $0x10] sm:$0xf]
    %v884 = vld [vmem:[#allocation13 + $0x14] sm:$0xf]
    %v885 = vld [vmem:[#allocation13 + $0x18] sm:$0xf]
    %v886 = vld [vmem:[#allocation13 + $0x1c] sm:$0xf]
    %v887 = vld [vmem:[#allocation13 + $0x20] sm:$0xf]
    %v888 = vld [vmem:[#allocation13 + $0x24] sm:$0xf]
    %v889 = vld [vmem:[#allocation13 + $0x28] sm:$0xf]
    %v890 = vld [vmem:[#allocation13 + $0x2c] sm:$0xf]
    %v891 = vld [vmem:[#allocation13 + $0x30] sm:$0xf]
    %v892 = vld [vmem:[#allocation13 + $0x34] sm:$0xf]
    %v893 = vld [vmem:[#allocation13 + $0x38] sm:$0xf]
    %v894 = vld [vmem:[#allocation13 + $0x3c] sm:$0xf]
    %v895 = vld [vmem:[%s10] sm:$0x1]
    %v897 = vlaneseq
    %v898 = vshrl.u32 %v897, 7
    %v899 = vsub.s32 0, %v898
    %v900 = vrot.slane %v895, %v899
    %v918 = vunpack.c.l.b16 %v879
    %v919 = vunpack.c.l.b16 %v880
    %v920 = vunpack.c.l.b16 %v881
    %v921 = vunpack.c.l.b16 %v882
    %v922 = vunpack.c.l.b16 %v883
    %v923 = vunpack.c.l.b16 %v884
    %v924 = vunpack.c.l.b16 %v885
    %v925 = vunpack.c.l.b16 %v886
    %v926 = vunpack.c.l.b16 %v887
    %v927 = vunpack.c.l.b16 %v888
    %v928 = vunpack.c.l.b16 %v889
    %v929 = vunpack.c.l.b16 %v890
    %v930 = vunpack.c.l.b16 %v891
    %v931 = vunpack.c.l.b16 %v892
    %v932 = vunpack.c.l.b16 %v893
    %v933 = vunpack.c.l.b16 %v894
    %v934 = vpack.c.b16 %v919, %v918
    %v935 = vpack.c.b16 %v921, %v920
    %v936 = vpack.c.b16 %v923, %v922
    %v937 = vpack.c.b16 %v925, %v924
    %v938 = vpack.c.b16 %v927, %v926
    %v939 = vpack.c.b16 %v929, %v928
    %v940 = vpack.c.b16 %v931, %v930
    %v941 = vpack.c.b16 %v933, %v932
    %950 = vmatprep.subr.bf16.mxu0 0
    %951 = vmatpush1.bf16.msra.mxu0 %v934
    %952 = vmatprep.subr.bf16.mxu0 0
    %953 = vmatpush1.bf16.msra.mxu0 %v935
    %954 = vmatprep.subr.bf16.mxu0 0
    %955 = vmatpush1.bf16.msra.mxu0 %v936
    %956 = vmatprep.subr.bf16.mxu0 0
    %957 = vmatpush1.bf16.msra.mxu0 %v937
    %958 = vmatprep.subr.bf16.mxu0 0
    %959 = vmatpush1.bf16.msra.mxu0 %v938
    %960 = vmatprep.subr.bf16.mxu0 0
    %961 = vmatpush1.bf16.msra.mxu0 %v939
    %962 = vmatprep.subr.bf16.mxu0 0
    %963 = vmatpush1.bf16.msra.mxu0 %v940
    %964 = vmatprep.subr.bf16.mxu0 0
    %965 = vmatpush1.bf16.msra.mxu0 %v941
    %966 = vmatprep.subr.bf16.mxu0 0
    %967 = vmatpush1.bf16.msra.mxu0 0
    %968 = vmatprep.subr.bf16.mxu0 0
    %969 = vmatpush1.bf16.msra.mxu0 0
    %970 = vmatprep.subr.bf16.mxu0 0
    %971 = vmatpush1.bf16.msra.mxu0 0
    %972 = vmatprep.subr.bf16.mxu0 0
    %973 = vmatpush1.bf16.msra.mxu0 0
    %974 = vmatprep.subr.bf16.mxu0 0
    %975 = vmatpush1.bf16.msra.mxu0 0
    %976 = vmatprep.subr.bf16.mxu0 0
    %977 = vmatpush1.bf16.msra.mxu0 0
    %978 = vmatprep.subr.bf16.mxu0 0
    %979 = vmatpush1.bf16.msra.mxu0 0
    %980 = vmatprep.subr.bf16.mxu0 0
    %981 = vmatpush1.bf16.msra.mxu0 0
    %982 = vmatprep.mubr.bf16.mxu0 0
    %983 = vmatmul.mubr.bf16.gmra.mrb[0].mxu0 %v739
    %v984 = vpop.f32.mrb[0].mxu0
    %v985 = vadd.f32 %v900, %v984
    %v986 = vpop.f32.mrb[0].mxu0
    %v987 = vpop.f32.mrb[0].mxu0
    %v988 = vadd.f32 %v900, %v987
    %v989 = vpop.f32.mrb[0].mxu0
    %990 = vmatprep.mubr.bf16.mxu0 0
    %991 = vmatmul.mubr.bf16.gmra.mrb[0].mxu0 %v740
    %v992 = vpop.f32.mrb[0].mxu0
    %v993 = vadd.f32 %v900, %v992
    %v994 = vpop.f32.mrb[0].mxu0
    %v995 = vpop.f32.mrb[0].mxu0
    %v996 = vadd.f32 %v900, %v995
    %v997 = vpop.f32.mrb[0].mxu0
    %998 = vmatprep.mubr.bf16.mxu0 0
    %999 = vmatmul.mubr.bf16.gmra.mrb[0].mxu0 %v741
    %v1000 = vpop.f32.mrb[0].mxu0
    %v1001 = vadd.f32 %v900, %v1000
    %v1002 = vpop.f32.mrb[0].mxu0
    %v1003 = vpop.f32.mrb[0].mxu0
    %v1004 = vadd.f32 %v900, %v1003
    %v1005 = vpop.f32.mrb[0].mxu0
    %1006 = vmatprep.mubr.bf16.mxu0 0
    %1007 = vmatmul.mubr.bf16.gmra.mrb[0].mxu0 %v742
    %v1008 = vpop.f32.mrb[0].mxu0
    %v1009 = vadd.f32 %v900, %v1008
    %v1010 = vpop.f32.mrb[0].mxu0
    %v1011 = vpop.f32.mrb[0].mxu0
    %v1012 = vadd.f32 %v900, %v1011
    %v1013 = vpop.f32.mrb[0].mxu0
    %1014 = vdwg.mxu0
    %v1015 = vmul.f32 %v730, %v849
    %v1016 = vmul.f32 %v730, %v852
    %v1017 = vmul.f32 %v730, %v857
    %v1018 = vmul.f32 %v730, %v860
    %v1019 = vmul.f32 %v730, %v865
    %v1020 = vmul.f32 %v730, %v868
    %v1021 = vmul.f32 %v730, %v873
    %v1022 = vmul.f32 %v730, %v876
    %1023 = vadd.xlane.f32.xlu0 %v1015
    %v1024 = vpop.xlane.xlu0 %1023
    %1025 = vadd.xlane.f32.xlu0 %v1016
    %v1026 = vpop.xlane.xlu0 %1025
    %1027 = vadd.xlane.f32.xlu0 %v1017
    %v1028 = vpop.xlane.xlu0 %1027
    %1029 = vadd.xlane.f32.xlu0 %v1018
    %v1030 = vpop.xlane.xlu0 %1029
    %1031 = vadd.xlane.f32.xlu0 %v1019
    %v1032 = vpop.xlane.xlu0 %1031
    %1033 = vadd.xlane.f32.xlu0 %v1020
    %v1034 = vpop.xlane.xlu0 %1033
    %1035 = vadd.xlane.f32.xlu0 %v1021
    %v1036 = vpop.xlane.xlu0 %1035
    %1037 = vadd.xlane.f32.xlu0 %v1022
    %v1038 = vpop.xlane.xlu0 %1037
    %v1039 = vmax.f32 %v1024, %v1032
    %v1040 = vmax.f32 %v1026, %v1034
    %v1041 = vmax.f32 %v1028, %v1036
    %v1042 = vmax.f32 %v1030, %v1038
    %v1043 = vmax.f32 %v1039, %v1040
    %v1044 = vmax.f32 %v1041, %v1042
    %v1045 = vmax.f32 %v1043, %v1044
    %v1046 = vsub.f32 %v1024, %v1045
    %v1047 = vsub.f32 %v1026, %v1045
    %v1048 = vsub.f32 %v1028, %v1045
    %v1049 = vsub.f32 %v1030, %v1045
    %v1050 = vsub.f32 %v1032, %v1045
    %v1051 = vsub.f32 %v1034, %v1045
    %v1052 = vsub.f32 %v1036, %v1045
    %v1053 = vsub.f32 %v1038, %v1045
    %v1054 = vmul.f32 %v1046, 1.442695
    %v1055 = vpow.pop %v1054
    %v1056 = vmul.f32 %v1047, 1.442695
    %v1057 = vpow.pop %v1056
    %v1058 = vmul.f32 %v1048, 1.442695
    %v1059 = vpow.pop %v1058
    %v1060 = vmul.f32 %v1049, 1.442695
    %v1061 = vpow.pop %v1060
    %v1062 = vmul.f32 %v1050, 1.442695
    %v1063 = vpow.pop %v1062
    %v1064 = vmul.f32 %v1051, 1.442695
    %v1065 = vpow.pop %v1064
    %v1066 = vmul.f32 %v1052, 1.442695
    %v1067 = vpow.pop %v1066
    %v1068 = vmul.f32 %v1053, 1.442695
    %v1069 = vpow.pop %v1068
    %v1070 = vadd.f32 %v1055, %v1057
    %v1071 = vadd.f32 %v1070, %v1059
    %v1072 = vadd.f32 %v1071, %v1061
    %v1073 = vadd.f32 %v1072, %v1063
    %v1074 = vadd.f32 %v1073, %v1065
    %v1075 = vadd.f32 %v1074, %v1067
    %v1076 = vadd.f32 %v1075, %v1069
    %v1077 = vrcp.pop %v1076
    %v1078 = vmul.f32 %v1055, %v1077
    %v1079 = vmul.f32 %v1057, %v1077
    %v1080 = vmul.f32 %v1059, %v1077
    %v1081 = vmul.f32 %v1061, %v1077
    %v1082 = vmul.f32 %v1063, %v1077
    %v1083 = vmul.f32 %v1065, %v1077
    %v1084 = vmul.f32 %v1067, %v1077
    %v1085 = vmul.f32 %v1069, %v1077
    %v1086 = vmul.f32 %v1078, %v985
    %v1087 = vmul.f32 %v1079, %v988
    %v1088 = vmul.f32 %v1080, %v993
    %v1089 = vmul.f32 %v1081, %v996
    %v1090 = vmul.f32 %v1082, %v1001
    %v1091 = vmul.f32 %v1083, %v1004
    %v1092 = vmul.f32 %v1084, %v1009
    %v1093 = vmul.f32 %v1085, %v1012
    %v1094 = vadd.f32 %v1086, %v1087
    %v1095 = vadd.f32 %v1094, %v1088
    %v1096 = vadd.f32 %v1095, %v1089
    %v1097 = vadd.f32 %v1096, %v1090
    %v1098 = vadd.f32 %v1097, %v1091
    %v1099 = vadd.f32 %v1098, %v1092
    %v1100 = vadd.f32 %v1099, %v1093
    %v1101 = vpack.c.bf16 %v730, %v730
    %v1102 = vld [vmem:[#allocation14] sm:$0xf]
    %v1103 = vld [vmem:[#allocation14 + $0x4] sm:$0xf]
    %v1104 = vld [vmem:[#allocation14 + $0x8] sm:$0xf]
    %v1105 = vld [vmem:[#allocation14 + $0xc] sm:$0xf]
    %v1106 = vld [vmem:[#allocation14 + $0x10] sm:$0xf]
    %v1107 = vld [vmem:[#allocation14 + $0x14] sm:$0xf]
    %v1108 = vld [vmem:[#allocation14 + $0x18] sm:$0xf]
    %v1109 = vld [vmem:[#allocation14 + $0x1c] sm:$0xf]
    %v1110 = vld [vmem:[#allocation14 + $0x20] sm:$0xf]
    %v1111 = vld [vmem:[#allocation14 + $0x24] sm:$0xf]
    %v1112 = vld [vmem:[#allocation14 + $0x28] sm:$0xf]
    %v1113 = vld [vmem:[#allocation14 + $0x2c] sm:$0xf]
    %v1114 = vld [vmem:[#allocation14 + $0x30] sm:$0xf]
    %v1115 = vld [vmem:[#allocation14 + $0x34] sm:$0xf]
    %v1116 = vld [vmem:[#allocation14 + $0x38] sm:$0xf]
    %v1117 = vld [vmem:[#allocation14 + $0x3c] sm:$0xf]
    %v1118 = vpack.c.bf16 %v1100, %v1100
    %v1119 = vld [vmem:[#allocation16] sm:$0xf]
    %v1120 = vld [vmem:[#allocation16 + $0x4] sm:$0xf]
    %v1121 = vld [vmem:[#allocation16 + $0x8] sm:$0xf]
    %v1122 = vld [vmem:[#allocation16 + $0xc] sm:$0xf]
    %v1123 = vld [vmem:[#allocation16 + $0x10] sm:$0xf]
    %v1124 = vld [vmem:[#allocation16 + $0x14] sm:$0xf]
    %v1125 = vld [vmem:[#allocation16 + $0x18] sm:$0xf]
    %v1126 = vld [vmem:[#allocation16 + $0x1c] sm:$0xf]
    %v1127 = vld [vmem:[#allocation16 + $0x20] sm:$0xf]
    %v1128 = vld [vmem:[#allocation16 + $0x24] sm:$0xf]
    %v1129 = vld [vmem:[#allocation16 + $0x28] sm:$0xf]
    %v1130 = vld [vmem:[#allocation16 + $0x2c] sm:$0xf]
    %v1131 = vld [vmem:[#allocation16 + $0x30] sm:$0xf]
    %v1132 = vld [vmem:[#allocation16 + $0x34] sm:$0xf]
    %v1133 = vld [vmem:[#allocation16 + $0x38] sm:$0xf]
    %v1134 = vld [vmem:[#allocation16 + $0x3c] sm:$0xf]
    %v1151 = vunpack.c.l.b16 %v1119
    %v1152 = vunpack.c.l.b16 %v1120
    %v1153 = vunpack.c.l.b16 %v1121
    %v1154 = vunpack.c.l.b16 %v1122
    %v1155 = vunpack.c.l.b16 %v1123
    %v1156 = vunpack.c.l.b16 %v1124
    %v1157 = vunpack.c.l.b16 %v1125
    %v1158 = vunpack.c.l.b16 %v1126
    %v1159 = vunpack.c.l.b16 %v1127
    %v1160 = vunpack.c.l.b16 %v1128
    %v1161 = vunpack.c.l.b16 %v1129
    %v1162 = vunpack.c.l.b16 %v1130
    %v1163 = vunpack.c.l.b16 %v1131
    %v1164 = vunpack.c.l.b16 %v1132
    %v1165 = vunpack.c.l.b16 %v1133
    %v1166 = vunpack.c.l.b16 %v1134
    %v1167 = vpack.c.b16 %v1152, %v1151
    %v1168 = vpack.c.b16 %v1154, %v1153
    %v1169 = vpack.c.b16 %v1156, %v1155
    %v1170 = vpack.c.b16 %v1158, %v1157
    %v1171 = vpack.c.b16 %v1160, %v1159
    %v1172 = vpack.c.b16 %v1162, %v1161
    %v1173 = vpack.c.b16 %v1164, %v1163
    %v1174 = vpack.c.b16 %v1166, %v1165
    %1183 = vmatprep.subr.bf16.mxu0 0
    %1184 = vmatpush1.bf16.msra.mxu0 %v1167
    %1185 = vmatprep.subr.bf16.mxu0 0
    %1186 = vmatpush1.bf16.msra.mxu0 %v1168
    %1187 = vmatprep.subr.bf16.mxu0 0
    %1188 = vmatpush1.bf16.msra.mxu0 %v1169
    %1189 = vmatprep.subr.bf16.mxu0 0
    %1190 = vmatpush1.bf16.msra.mxu0 %v1170
    %1191 = vmatprep.subr.bf16.mxu0 0
    %1192 = vmatpush1.bf16.msra.mxu0 %v1171
    %1193 = vmatprep.subr.bf16.mxu0 0
    %1194 = vmatpush1.bf16.msra.mxu0 %v1172
    %1195 = vmatprep.subr.bf16.mxu0 0
    %1196 = vmatpush1.bf16.msra.mxu0 %v1173
    %1197 = vmatprep.subr.bf16.mxu0 0
    %1198 = vmatpush1.bf16.msra.mxu0 %v1174
    %1199 = vmatprep.subr.bf16.mxu0 0
    %1200 = vmatpush1.bf16.msra.mxu0 0
    %1201 = vmatprep.subr.bf16.mxu0 0
    %1202 = vmatpush1.bf16.msra.mxu0 0
    %1203 = vmatprep.subr.bf16.mxu0 0
    %1204 = vmatpush1.bf16.msra.mxu0 0
    %1205 = vmatprep.subr.bf16.mxu0 0
    %1206 = vmatpush1.bf16.msra.mxu0 0
    %1207 = vmatprep.subr.bf16.mxu0 0
    %1208 = vmatpush1.bf16.msra.mxu0 0
    %1209 = vmatprep.subr.bf16.mxu0 0
    %1210 = vmatpush1.bf16.msra.mxu0 0
    %1211 = vmatprep.subr.bf16.mxu0 0
    %1212 = vmatpush1.bf16.msra.mxu0 0
    %1213 = vmatprep.subr.bf16.mxu0 0
    %1214 = vmatpush1.bf16.msra.mxu0 0
    %1215 = vmatprep.mubr.bf16.mxu0 0
    %1216 = vmatmul.mubr.bf16.gmra.mrb[0].mxu0 %v1118
    %v1217 = vpop.f32.mrb[0].mxu0
    %v1218 = vadd.f32 0.0, %v1217
    %v1219 = vpop.f32.mrb[0].mxu0
    %v1220 = vpop.f32.mrb[0].mxu0
    %v1221 = vpop.f32.mrb[0].mxu0
    %1222 = vdwg.mxu0
    %v1239 = vunpack.c.l.b16 %v1102
    %v1240 = vunpack.c.l.b16 %v1103
    %v1241 = vunpack.c.l.b16 %v1104
    %v1242 = vunpack.c.l.b16 %v1105
    %v1243 = vunpack.c.l.b16 %v1106
    %v1244 = vunpack.c.l.b16 %v1107
    %v1245 = vunpack.c.l.b16 %v1108
    %v1246 = vunpack.c.l.b16 %v1109
    %v1247 = vunpack.c.l.b16 %v1110
    %v1248 = vunpack.c.l.b16 %v1111
    %v1249 = vunpack.c.l.b16 %v1112
    %v1250 = vunpack.c.l.b16 %v1113
    %v1251 = vunpack.c.l.b16 %v1114
    %v1252 = vunpack.c.l.b16 %v1115
    %v1253 = vunpack.c.l.b16 %v1116
    %v1254 = vunpack.c.l.b16 %v1117
    %v1255 = vpack.c.b16 %v1240, %v1239
    %v1256 = vpack.c.b16 %v1242, %v1241
    %v1257 = vpack.c.b16 %v1244, %v1243
    %v1258 = vpack.c.b16 %v1246, %v1245
    %v1259 = vpack.c.b16 %v1248, %v1247
    %v1260 = vpack.c.b16 %v1250, %v1249
    %v1261 = vpack.c.b16 %v1252, %v1251
    %v1262 = vpack.c.b16 %v1254, %v1253
    %1271 = vmatprep.subr.bf16.mxu0 0
    %1272 = vmatpush1.bf16.msra.mxu0 %v1255
    %1273 = vmatprep.subr.bf16.mxu0 0
    %1274 = vmatpush1.bf16.msra.mxu0 %v1256
    %1275 = vmatprep.subr.bf16.mxu0 0
    %1276 = vmatpush1.bf16.msra.mxu0 %v1257
    %1277 = vmatprep.subr.bf16.mxu0 0
    %1278 = vmatpush1.bf16.msra.mxu0 %v1258
    %1279 = vmatprep.subr.bf16.mxu0 0
    %1280 = vmatpush1.bf16.msra.mxu0 %v1259
    %1281 = vmatprep.subr.bf16.mxu0 0
    %1282 = vmatpush1.bf16.msra.mxu0 %v1260
    %1283 = vmatprep.subr.bf16.mxu0 0
    %1284 = vmatpush1.bf16.msra.mxu0 %v1261
    %1285 = vmatprep.subr.bf16.mxu0 0
    %1286 = vmatpush1.bf16.msra.mxu0 %v1262
    %1287 = vmatprep.subr.bf16.mxu0 0
    %1288 = vmatpush1.bf16.msra.mxu0 0
    %1289 = vmatprep.subr.bf16.mxu0 0
    %1290 = vmatpush1.bf16.msra.mxu0 0
    %1291 = vmatprep.subr.bf16.mxu0 0
    %1292 = vmatpush1.bf16.msra.mxu0 0
    %1293 = vmatprep.subr.bf16.mxu0 0
    %1294 = vmatpush1.bf16.msra.mxu0 0
    %1295 = vmatprep.subr.bf16.mxu0 0
    %1296 = vmatpush1.bf16.msra.mxu0 0
    %1297 = vmatprep.subr.bf16.mxu0 0
    %1298 = vmatpush1.bf16.msra.mxu0 0
    %1299 = vmatprep.subr.bf16.mxu0 0
    %1300 = vmatpush1.bf16.msra.mxu0 0
    %1301 = vmatprep.subr.bf16.mxu0 0
    %1302 = vmatpush1.bf16.msra.mxu0 0
    %1303 = vmatprep.mubr.bf16.mxu0 0
    %1304 = vmatmul.mubr.bf16.gmra.mrb[0].mxu0 %v1101
    %v1305 = vpop.f32.mrb[0].mxu0
    %v1306 = vadd.f32 %v1218, %v1305
    %v1307 = vpop.f32.mrb[0].mxu0
    %v1308 = vpop.f32.mrb[0].mxu0
    %v1309 = vpop.f32.mrb[0].mxu0
    %1310 = vdwg.mxu0
    %v1311 = vld [vmem:[%s13] sm:$0x1]
    %v1313 = vlaneseq
    %v1314 = vshrl.u32 %v1313, 7
    %v1315 = vsub.s32 0, %v1314
    %v1316 = vrot.slane %v1311, %v1315
    %v1318 = vadd.f32 %v1306, %v1316
    %v1319 = vtanh.pop %v1318
    %v1320 = vpack.c.bf16 %v1319, %v1319
    %v1321 = vld [vmem:[#allocation17] sm:$0xf]
    %v1322 = vld [vmem:[#allocation17 + $0x4] sm:$0xf]
    %v1323 = vld [vmem:[#allocation17 + $0x8] sm:$0xf]
    %v1324 = vld [vmem:[#allocation17 + $0xc] sm:$0xf]
    %v1325 = vld [vmem:[#allocation17 + $0x10] sm:$0xf]
    %v1326 = vld [vmem:[#allocation17 + $0x14] sm:$0xf]
    %v1327 = vld [vmem:[#allocation17 + $0x18] sm:$0xf]
    %v1328 = vld [vmem:[#allocation17 + $0x1c] sm:$0xf]
    %v1329 = vld [vmem:[#allocation17 + $0x20] sm:$0xf]
    %v1330 = vld [vmem:[#allocation17 + $0x24] sm:$0xf]
    %v1331 = vld [vmem:[#allocation17 + $0x28] sm:$0xf]
    %v1332 = vld [vmem:[#allocation17 + $0x2c] sm:$0xf]
    %v1333 = vld [vmem:[#allocation17 + $0x30] sm:$0xf]
    %v1334 = vld [vmem:[#allocation17 + $0x34] sm:$0xf]
    %v1335 = vld [vmem:[#allocation17 + $0x38] sm:$0xf]
    %v1336 = vld [vmem:[#allocation17 + $0x3c] sm:$0xf]
    %v1337 = vld [vmem:[%s15] sm:$0x1]
    %v1339 = vlaneseq
    %v1340 = vshrl.u32 %v1339, 7
    %v1341 = vsub.s32 0, %v1340
    %v1342 = vrot.slane %v1337, %v1341
    %v1360 = vunpack.c.l.b16 %v1321
    %v1361 = vunpack.c.l.b16 %v1322
    %v1362 = vunpack.c.l.b16 %v1323
    %v1363 = vunpack.c.l.b16 %v1324
    %v1364 = vunpack.c.l.b16 %v1325
    %v1365 = vunpack.c.l.b16 %v1326
    %v1366 = vunpack.c.l.b16 %v1327
    %v1367 = vunpack.c.l.b16 %v1328
    %v1368 = vunpack.c.l.b16 %v1329
    %v1369 = vunpack.c.l.b16 %v1330
    %v1370 = vunpack.c.l.b16 %v1331
    %v1371 = vunpack.c.l.b16 %v1332
    %v1372 = vunpack.c.l.b16 %v1333
    %v1373 = vunpack.c.l.b16 %v1334
    %v1374 = vunpack.c.l.b16 %v1335
    %v1375 = vunpack.c.l.b16 %v1336
    %v1376 = vpack.c.b16 %v1361, %v1360
    %v1377 = vpack.c.b16 %v1363, %v1362
    %v1378 = vpack.c.b16 %v1365, %v1364
    %v1379 = vpack.c.b16 %v1367, %v1366
    %v1380 = vpack.c.b16 %v1369, %v1368
    %v1381 = vpack.c.b16 %v1371, %v1370
    %v1382 = vpack.c.b16 %v1373, %v1372
    %v1383 = vpack.c.b16 %v1375, %v1374
    %1392 = vmatprep.subr.bf16.mxu0 0
    %1393 = vmatpush1.bf16.msra.mxu0 %v1376
    %1394 = vmatprep.subr.bf16.mxu0 0
    %1395 = vmatpush1.bf16.msra.mxu0 %v1377
    %1396 = vmatprep.subr.bf16.mxu0 0
    %1397 = vmatpush1.bf16.msra.mxu0 %v1378
    %1398 = vmatprep.subr.bf16.mxu0 0
    %1399 = vmatpush1.bf16.msra.mxu0 %v1379
    %1400 = vmatprep.subr.bf16.mxu0 0
    %1401 = vmatpush1.bf16.msra.mxu0 %v1380
    %1402 = vmatprep.subr.bf16.mxu0 0
    %1403 = vmatpush1.bf16.msra.mxu0 %v1381
    %1404 = vmatprep.subr.bf16.mxu0 0
    %1405 = vmatpush1.bf16.msra.mxu0 %v1382
    %1406 = vmatprep.subr.bf16.mxu0 0
    %1407 = vmatpush1.bf16.msra.mxu0 %v1383
    %1408 = vmatprep.subr.bf16.mxu0 0
    %1409 = vmatpush1.bf16.msra.mxu0 0
    %1410 = vmatprep.subr.bf16.mxu0 0
    %1411 = vmatpush1.bf16.msra.mxu0 0
    %1412 = vmatprep.subr.bf16.mxu0 0
    %1413 = vmatpush1.bf16.msra.mxu0 0
    %1414 = vmatprep.subr.bf16.mxu0 0
    %1415 = vmatpush1.bf16.msra.mxu0 0
    %1416 = vmatprep.subr.bf16.mxu0 0
    %1417 = vmatpush1.bf16.msra.mxu0 0
    %1418 = vmatprep.subr.bf16.mxu0 0
    %1419 = vmatpush1.bf16.msra.mxu0 0
    %1420 = vmatprep.subr.bf16.mxu0 0
    %1421 = vmatpush1.bf16.msra.mxu0 0
    %1422 = vmatprep.subr.bf16.mxu0 0
    %1423 = vmatpush1.bf16.msra.mxu0 0
    %1424 = vmatprep.mubr.bf16.mxu0 0
    %1425 = vmatmul.mubr.bf16.gmra.mrb[0].mxu0 %v1320
    %v1426 = vpop.f32.mrb[0].mxu0
    %v1427 = vadd.f32 %v1342, %v1426
    %v1428 = vpop.f32.mrb[0].mxu0
    %v1429 = vpop.f32.mrb[0].mxu0
    %v1430 = vpop.f32.mrb[0].mxu0
    %1431 = vdwg.mxu0
    %1432 = vmax.xlane.f32.xlu0 %v1427
    %v1433 = vpop.xlane.xlu0 %1432
    %v1434 = vsub.f32 %v1427, %v1433
    %v1435 = vmul.f32 %v1434, 1.442695
    %v1436 = vpow.pop %v1435
    %1437 = vadd.xlane.f32.xlu0 %v1436
    %v1438 = vpop.xlane.xlu0 %1437
    %v1439 = vrcp.pop %v1438
    %v1440 = vmul.f32 %v1436, %v1439
    %1441 = vst [vmem:[#allocation19] sm:$0xff] %v1440
    %1442 = vst [vmem:[#allocation20] sm:$0xff] %v730
    // Predicated region
    $region106: #{tpu_custom_call.1} parent=1 // pred_check
      _
    $region107: #{tpu_custom_call.1} parent=1 // pred_check_branch
      %1444 = sbr.rel (0) target = $region109
    $region108: #{tpu_custom_call.1} parent=1 // pred_region
      %s1446 = ssub.s32 128, 128
      %1447 = vsyncadd [#allocation4], %s1446
      %s1449 = sshll.u32 [#allocation19], 4
      %s1450 = int_to_ptr.vmem [resolvable:$true] %s1449
      %1452 = dma.vmem_to_hbm [thread:$0]  %s1450, 128, %s16, [#allocation4]
    $region109: #{tpu_custom_call.1} parent=1 // pred_fallthru
      _
    // Predicated region
    $region110: #{tpu_custom_call.1} parent=1 // pred_check
      _
    $region111: #{tpu_custom_call.1} parent=1 // pred_check_branch
      %1454 = sbr.rel (0) target = $region113
    $region112: #{tpu_custom_call.1} parent=1 // pred_region
      %s1456 = ssub.s32 128, 128
      %1457 = vsyncadd [#allocation21], %s1456
      %s1459 = sshll.u32 [#allocation20], 4
      %s1460 = int_to_ptr.vmem [resolvable:$true] %s1459
      %1462 = dma.vmem_to_hbm [thread:$0]  %s1460, 128, %s17, [#allocation21]
    $region113: #{tpu_custom_call.1} parent=1 // pred_fallthru
      _
    // Predicated region
    $region114: #{tpu_custom_call.1} parent=1 // pred_check
      _
    $region115: #{tpu_custom_call.1} parent=1 // pred_check_branch
      %1464 = sbr.rel (0) target = $region117
    $region116: #{tpu_custom_call.1} parent=1 // pred_region
      %1465 = dma.done [#allocation4], 128
    $region117: #{tpu_custom_call.1} parent=1 // pred_fallthru
      _
    // Predicated region
    $region118: #{tpu_custom_call.1} parent=1 // pred_check
      _
    $region119: #{tpu_custom_call.1} parent=1 // pred_check_branch
      %1467 = sbr.rel (0) target = $region121
    $region120: #{tpu_custom_call.1} parent=1 // pred_region
      %1468 = dma.done [#allocation21], 128
    $region121: #{tpu_custom_call.1} parent=1 // pred_fallthru
      _
    %1469 = vsyncpa [#allocation3], 1
    %1470 = vsyncpa [#allocation6], 1
    %1471 = vsyncpa [#allocation9], 1
    %1472 = vsyncpa [#allocation12], 1
    %1473 = vsyncpa [#allocation15], 1
    %1474 = vsyncpa [#allocation18], 1
    %1475 = vsyncpa [#allocation4], 1
    %1476 = vsyncpa [#allocation21], 1

</llo_original>
